<compile_context>
chip_gen: v7x
topology: tpu7x:2x2x1
jax: 0.10.0
libtpu: 0.0.40
codegen_flags: <defaults>
</compile_context>

<pallas_src>
import functools

import jax
import jax.numpy as jnp
from jax.experimental import pallas as pl
from jax.experimental.pallas import tpu as pltpu

IN_CH = 13      # MeshConf.in_channel
HID = 32        # MeshConf.hidden
HEAD_HID = 10   # HeadConf.hidden
EPS = 1e-5      # BatchNorm1d eps
LANES = 128     # node axis is padded to a multiple of the lane width

# Column layout of the packed parameter matrix `pvec` (shape (HID, N_PCOLS)).
COL_HW1 = 0              # cols 0..31  : head Linear1 weight^T, zero-padded to (32, 32)
COL_BN0_W = 32
COL_BN0_B = 33
COL_B = 34               # cols 34..37 : GCN biases (layers 1..4)
COL_BN_W = 38            # cols 38..41 : GCN BatchNorm gammas
COL_BN_B = 42            # cols 42..45 : GCN BatchNorm betas
COL_HB1 = 46
COL_HBN_W = 47
COL_HBN_B = 48
COL_HW2 = 49
COL_HB2 = 50
N_PCOLS = 51


def mesh_gnn_kernel(x_ref, a_ref, pool_ref, mask_ref, w_ref, p_ref, out_ref,
                    *, inv_n, inv_b):
    mask = mask_ref[...]          # (1, N_pad): 1.0 for real nodes, 0.0 for pad
    a_hat = a_ref[...]            # (N_pad, N_pad) bf16 symmetric normalized adjacency

    def col(i):                   # (HID, 1) static lane slice of the param pack (free)
        return p_ref[:, i:i + 1]

    def bn_nodes(h, gamma, beta):
        # BatchNorm1d over the node axis (lanes). Pad nodes are masked out and the
        # divisor is the real node count (biased variance, PyTorch train mode).
        mu = jnp.sum(h * mask, axis=1, keepdims=True) * inv_n
        c = (h - mu) * mask
        var = jnp.sum(c * c, axis=1, keepdims=True) * inv_n
        return c * jax.lax.rsqrt(var + EPS) * gamma + beta

    # bn0 on the channel-padded input (pad channels stay exactly zero).
    h = bn_nodes(x_ref[...], col(COL_BN0_W), col(COL_BN0_B))

    def gcn_block(h, layer):
        # GCNConv in (C, N) layout:  m = W^T h ;  agg = m @ A_hat  (+ bias).
        # A_hat is symmetric, so right-multiplying by A_hat == row aggregation.
        # bf16 MXU inputs, f32 accumulation.
        m = jnp.dot(w_ref[layer], h.astype(jnp.bfloat16),
                    preferred_element_type=jnp.float32)
        agg = jnp.dot(m.astype(jnp.bfloat16), a_hat,
                      preferred_element_type=jnp.float32)
        agg = agg + col(COL_B + layer)
        return bn_nodes(jnp.maximum(agg, 0.0),
                        col(COL_BN_W + layer), col(COL_BN_B + layer))

    for layer in range(4):        # static unroll: 4 GCN layers
        h = gcn_block(h, layer)

    # global_mean_pool: (HID, N_pad) @ (N_pad, B) -> (HID, B); pad rows of poolT are 0.
    feats = jnp.dot(h, pool_ref[...], preferred_element_type=jnp.float32)

    # Head: Linear(32,10) -> ReLU -> BatchNorm1d(10) -> Linear(10,1),
    # carried with the 10-wide dim zero-padded to 32 sublanes (pad rows stay 0).
    z = jnp.dot(p_ref[:, COL_HW1:COL_HW1 + HID], feats,
                preferred_element_type=jnp.float32) + col(COL_HB1)
    z = jnp.maximum(z, 0.0)
    mu = jnp.sum(z, axis=1, keepdims=True) * inv_b
    c = z - mu
    var = jnp.sum(c * c, axis=1, keepdims=True) * inv_b
    z = c * jax.lax.rsqrt(var + EPS) * col(COL_HBN_W) + col(COL_HBN_B)
    out_ref[...] = (jnp.sum(z * col(COL_HW2), axis=0, keepdims=True)
                    + p_ref[0:1, COL_HB2:COL_HB2 + 1])


def mesh_gnn_forward(x_nodes, a_hat, pool_mat, params):
    """Full MeshGNN forward in one Pallas call (all tiles resident in VMEM)."""
    n_nodes, in_ch = x_nodes.shape
    n_graphs = pool_mat.shape[0]
    n_pad = ((n_nodes + LANES - 1) // LANES) * LANES

    # Lane-dense (C, N) inputs: channels padded to HID, nodes padded to n_pad.
    xT = jnp.zeros((HID, n_pad), jnp.float32).at[:in_ch, :n_nodes].set(x_nodes.T)
    a_pad = (jnp.zeros((n_pad, n_pad), jnp.float32)
             .at[:n_nodes, :n_nodes].set(a_hat).astype(jnp.bfloat16))
    poolT = jnp.zeros((n_pad, n_graphs), jnp.float32).at[:n_nodes, :].set(pool_mat.T)
    mask = (jnp.arange(n_pad) < n_nodes).astype(jnp.float32)[None, :]

    # Pack the 4 GCN weights (transposed; layer-1 input channels zero-padded).
    w1t = jnp.zeros((HID, HID), jnp.float32).at[:, :in_ch].set(params["w1"].T)
    w_gcn = jnp.stack(
        [w1t, params["w2"].T, params["w3"].T, params["w4"].T]).astype(jnp.bfloat16)

    # Pack every remaining small parameter into one (HID, N_PCOLS) matrix.
    def pad32(v):
        return jnp.zeros((HID,), jnp.float32).at[:v.shape[0]].set(v)

    hw1t_pad = jnp.zeros((HID, HID), jnp.float32).at[:HEAD_HID, :].set(params["hw1"].T)
    vec_cols = jnp.stack(
        [pad32(params["bn0_w"]), pad32(params["bn0_b"]),
         pad32(params["b1"]), pad32(params["b2"]),
         pad32(params["b3"]), pad32(params["b4"]),
         pad32(params["bn1_w"]), pad32(params["bn2_w"]),
         pad32(params["bn3_w"]), pad32(params["bn4_w"]),
         pad32(params["bn1_b"]), pad32(params["bn2_b"]),
         pad32(params["bn3_b"]), pad32(params["bn4_b"]),
         pad32(params["hb1"]), pad32(params["hbn_w"]), pad32(params["hbn_b"]),
         pad32(params["hw2"].reshape(-1)), pad32(params["hb2"].reshape(-1))],
        axis=1)                                            # (HID, 19)
    pvec = jnp.concatenate([hw1t_pad, vec_cols], axis=1)   # (HID, N_PCOLS)

    inputs = (xT, a_pad, poolT, mask, w_gcn, pvec)

    needed = sum(int(a.size) * a.dtype.itemsize for a in inputs)
    vmem_limit = int(min(max(4 * needed + (8 << 20), 32 << 20), 100 << 20))

    vmem_spec = pl.BlockSpec(memory_space=pltpu.MemorySpace.VMEM)
    kernel = functools.partial(mesh_gnn_kernel,
                               inv_n=1.0 / n_nodes, inv_b=1.0 / n_graphs)
    # TODO(synk): for meshes with N >~ 3-4k nodes the dense A_hat no longer fits
    # VMEM (64 MiB on v7x); switch to a grid over A_hat row/col tiles (K axis
    # 'arbitrary' with an f32 accumulator scratch) and per-layer BN stat passes.
    out = pl.pallas_call(
        kernel,
        out_shape=jax.ShapeDtypeStruct((1, n_graphs), jnp.float32),
        in_specs=[vmem_spec] * len(inputs),
        out_specs=vmem_spec,
        compiler_params=pltpu.CompilerParams(vmem_limit_bytes=vmem_limit),
    )(*inputs)
    return out.T    # (B, 1), matching the PyTorch head output


def make_params(key):
    """Deterministic synthetic parameters matching the PyTorch module's shapes."""
    ks = jax.random.split(key, 8)

    def glorot(k, shape):
        fan_in, fan_out = shape
        lim = (6.0 / (fan_in + fan_out)) ** 0.5
        return jax.random.uniform(k, shape, jnp.float32, -lim, lim)

    ones = lambda n: jnp.ones((n,), jnp.float32)
    zeros = lambda n: jnp.zeros((n,), jnp.float32)
    return {
        # bn0 over the 13 input channels
        "bn0_w": ones(IN_CH), "bn0_b": zeros(IN_CH),
        # GCNConv layers: weight stored as (in, out), bias (out,)
        "w1": glorot(ks[0], (IN_CH, HID)), "b1": zeros(HID),
        "bn1_w": ones(HID), "bn1_b": zeros(HID),
        "w2": glorot(ks[1], (HID, HID)), "b2": zeros(HID),
        "bn2_w": ones(HID), "bn2_b": zeros(HID),
        "w3": glorot(ks[2], (HID, HID)), "b3": zeros(HID),
        "bn3_w": ones(HID), "bn3_b": zeros(HID),
        "w4": glorot(ks[3], (HID, HID)), "b4": zeros(HID),
        "bn4_w": ones(HID), "bn4_b": zeros(HID),
        # head: Linear(32,10) -> ReLU -> BN(10) -> Linear(10,1)
        "hw1": glorot(ks[4], (HID, HEAD_HID)),
        "hb1": jax.random.uniform(ks[5], (HEAD_HID,), jnp.float32, -0.1, 0.1),
        "hbn_w": ones(HEAD_HID), "hbn_b": zeros(HEAD_HID),
        "hw2": glorot(ks[6], (HEAD_HID, 1)),
        "hb2": jax.random.uniform(ks[7], (1,), jnp.float32, -0.1, 0.1),
    }


def build_graph(key, n_nodes, n_graphs, n_edges_per_graph):
    """Glue (plain JAX): dense GCN-normalized adjacency + mean-pool matrix."""
    nodes_per_graph = n_nodes // n_graphs
    ks = jax.random.split(key, 2 * n_graphs + 1)

    adj = jnp.zeros((n_nodes, n_nodes), jnp.float32)
    for g in range(n_graphs):
        lo = g * nodes_per_graph
        src = jax.random.randint(ks[2 * g], (n_edges_per_graph,), 0, nodes_per_graph) + lo
        dst = jax.random.randint(ks[2 * g + 1], (n_edges_per_graph,), 0, nodes_per_graph) + lo
        adj = adj.at[dst, src].set(1.0)
    # undirected + self loops (GCNConv add_self_loops=True)
    adj = jnp.clip(adj + adj.T + jnp.eye(n_nodes, dtype=jnp.float32), 0.0, 1.0)
    deg = jnp.sum(adj, axis=1)
    d_inv_sqrt = jax.lax.rsqrt(deg)
    a_hat = d_inv_sqrt[:, None] * adj * d_inv_sqrt[None, :]

    # batch assignment + mean-pool matrix
    batch = jnp.repeat(jnp.arange(n_graphs), nodes_per_graph)
    one_hot = (batch[None, :] == jnp.arange(n_graphs)[:, None]).astype(jnp.float32)
    pool_mat = one_hot / jnp.sum(one_hot, axis=1, keepdims=True)

    # node features: pos(3) + norm(3) + dha(4) + x(3) concatenated -> IN_CH = 13
    kp, kn, kd, kx = jax.random.split(ks[-1], 4)
    pos = jax.random.normal(kp, (n_nodes, 3), jnp.float32)
    nrm = jax.random.normal(kn, (n_nodes, 3), jnp.float32)
    dha = jax.random.normal(kd, (n_nodes, 4), jnp.float32)
    xtr = jax.random.normal(kx, (n_nodes, 3), jnp.float32)
    x_nodes = jnp.concatenate([pos, nrm, dha, xtr], axis=1)  # (N, 13)
    return x_nodes, a_hat, pool_mat


if __name__ == "__main__":
    key = jax.random.PRNGKey(0)
    k_graph, k_params = jax.random.split(key)

    # NOTE: this toy size (N=64, B=2) only exercises correctness; at this scale
    # the call is pure dispatch/DMA latency. Benchmark with N in the thousands
    # for the layout / bf16 / VMEM changes to show up in wall-clock.
    N_NODES = 64     # total mesh vertices
    N_GRAPHS = 2     # graphs in the batch (batch vector for global_mean_pool)
    N_EDGES = 128    # random edges per graph

    x_nodes, a_hat, pool_mat = build_graph(k_graph, N_NODES, N_GRAPHS, N_EDGES)
    params = make_params(k_params)

    # connectome is ignored by MeshGNN.forward, so it is not passed to the kernel.
    out = mesh_gnn_forward(x_nodes, a_hat, pool_mat, params)
    out = jax.block_until_ready(out)

    assert out.shape == (N_GRAPHS, 1)
    assert bool(jnp.all(jnp.isfinite(out)))
    print("KERNEL_OK")
</pallas_src>

<mosaic_0001>
module attributes {stable_mosaic.version = 11 : i64} {
  func.func @mesh_gnn_kernel(%arg0: memref<32x128xf32, #tpu.memory_space<vmem>>, %arg1: memref<128x128xbf16, #tpu.memory_space<vmem>>, %arg2: memref<128x2xf32, #tpu.memory_space<vmem>>, %arg3: memref<1x128xf32, #tpu.memory_space<vmem>>, %arg4: memref<4x32x32xbf16, #tpu.memory_space<vmem>>, %arg5: memref<32x51xf32, #tpu.memory_space<vmem>>, %arg6: memref<1x2xf32, #tpu.memory_space<vmem>>) attributes {dimension_semantics = [], scalar_prefetch = 0 : i64, scratch_operands = 0 : i64, tpu.core_type = #tpu.core_type<tc>} {
    %c0 = arith.constant 0 : index
    %c0_0 = arith.constant 0 : index
    %0 = vector.load %arg3[%c0, %c0_0] : memref<1x128xf32, #tpu.memory_space<vmem>>, vector<1x128xf32>
    %c0_1 = arith.constant 0 : index
    %c0_2 = arith.constant 0 : index
    %1 = vector.load %arg1[%c0_1, %c0_2] : memref<128x128xbf16, #tpu.memory_space<vmem>>, vector<128x128xbf16>
    %c0_3 = arith.constant 0 : index
    %c0_4 = arith.constant 0 : index
    %2 = vector.load %arg0[%c0_3, %c0_4] : memref<32x128xf32, #tpu.memory_space<vmem>>, vector<32x128xf32>
    %c0_5 = arith.constant 0 : index
    %c32 = arith.constant 32 : index
    %3 = vector.load %arg5[%c0_5, %c32] : memref<32x51xf32, #tpu.memory_space<vmem>>, vector<32x1xf32>
    %c0_6 = arith.constant 0 : index
    %c33 = arith.constant 33 : index
    %4 = vector.load %arg5[%c0_6, %c33] : memref<32x51xf32, #tpu.memory_space<vmem>>, vector<32x1xf32>
    %5 = vector.broadcast %0 : vector<1x128xf32> to vector<32x128xf32>
    %6 = arith.mulf %2, %5 : vector<32x128xf32>
    %cst = arith.constant dense<0.000000e+00> : vector<32xf32>
    %7 = vector.multi_reduction <add>, %6, %cst [1] : vector<32x128xf32> to vector<32xf32>
    %8 = vector.shape_cast %7 : vector<32xf32> to vector<32x1xf32>
    %cst_7 = arith.constant 1.562500e-02 : f32
    %9 = vector.broadcast %cst_7 : f32 to vector<32x1xf32>
    %10 = arith.mulf %8, %9 : vector<32x1xf32>
    %11 = vector.broadcast %10 : vector<32x1xf32> to vector<32x128xf32>
    %12 = arith.subf %2, %11 : vector<32x128xf32>
    %13 = vector.broadcast %0 : vector<1x128xf32> to vector<32x128xf32>
    %14 = arith.mulf %12, %13 : vector<32x128xf32>
    %15 = arith.mulf %14, %14 : vector<32x128xf32>
    %cst_8 = arith.constant dense<0.000000e+00> : vector<32xf32>
    %16 = vector.multi_reduction <add>, %15, %cst_8 [1] : vector<32x128xf32> to vector<32xf32>
    %17 = vector.shape_cast %16 : vector<32xf32> to vector<32x1xf32>
    %cst_9 = arith.constant 1.562500e-02 : f32
    %18 = vector.broadcast %cst_9 : f32 to vector<32x1xf32>
    %19 = arith.mulf %17, %18 : vector<32x1xf32>
    %cst_10 = arith.constant 9.99999974E-6 : f32
    %20 = vector.broadcast %cst_10 : f32 to vector<32x1xf32>
    %21 = arith.addf %19, %20 : vector<32x1xf32>
    %22 = math.rsqrt %21 : vector<32x1xf32>
    %23 = vector.broadcast %22 : vector<32x1xf32> to vector<32x128xf32>
    %24 = arith.mulf %14, %23 : vector<32x128xf32>
    %25 = vector.broadcast %3 : vector<32x1xf32> to vector<32x128xf32>
    %26 = arith.mulf %24, %25 : vector<32x128xf32>
    %27 = vector.broadcast %4 : vector<32x1xf32> to vector<32x128xf32>
    %28 = arith.addf %26, %27 : vector<32x128xf32>
    %c0_11 = arith.constant 0 : index
    %c0_12 = arith.constant 0 : index
    %c0_13 = arith.constant 0 : index
    %29 = vector.load %arg4[%c0_11, %c0_12, %c0_13] : memref<4x32x32xbf16, #tpu.memory_space<vmem>>, vector<1x32x32xbf16>
    %30 = vector.shape_cast %29 : vector<1x32x32xbf16> to vector<32x32xbf16>
    %31 = arith.truncf %28 : vector<32x128xf32> to vector<32x128xbf16>
    %cst_14 = arith.constant dense<0.000000e+00> : vector<32x128xf32>
    %32 = tpu.matmul %30, %31, %cst_14 {dimension_numbers = #tpu.dot_dimension_numbers<[1], [0], [0], [1], [0, 0, 1, 1], [], []>} : vector<32x32xbf16>, vector<32x128xbf16>, vector<32x128xf32> -> vector<32x128xf32>
    %33 = arith.truncf %32 : vector<32x128xf32> to vector<32x128xbf16>
    %cst_15 = arith.constant dense<0.000000e+00> : vector<32x128xf32>
    %34 = tpu.matmul %33, %1, %cst_15 {dimension_numbers = #tpu.dot_dimension_numbers<[1], [0], [0], [1], [0, 0, 1, 1], [], []>} : vector<32x128xbf16>, vector<128x128xbf16>, vector<32x128xf32> -> vector<32x128xf32>
    %c0_16 = arith.constant 0 : index
    %c34 = arith.constant 34 : index
    %35 = vector.load %arg5[%c0_16, %c34] : memref<32x51xf32, #tpu.memory_space<vmem>>, vector<32x1xf32>
    %36 = vector.broadcast %35 : vector<32x1xf32> to vector<32x128xf32>
    %37 = arith.addf %34, %36 : vector<32x128xf32>
    %cst_17 = arith.constant 0.000000e+00 : f32
    %38 = vector.broadcast %cst_17 : f32 to vector<32x128xf32>
    %39 = arith.maximumf %37, %38 : vector<32x128xf32>
    %c0_18 = arith.constant 0 : index
    %c38 = arith.constant 38 : index
    %40 = vector.load %arg5[%c0_18, %c38] : memref<32x51xf32, #tpu.memory_space<vmem>>, vector<32x1xf32>
    %c0_19 = arith.constant 0 : index
    %c42 = arith.constant 42 : index
    %41 = vector.load %arg5[%c0_19, %c42] : memref<32x51xf32, #tpu.memory_space<vmem>>, vector<32x1xf32>
    %42 = vector.broadcast %0 : vector<1x128xf32> to vector<32x128xf32>
    %43 = arith.mulf %39, %42 : vector<32x128xf32>
    %cst_20 = arith.constant dense<0.000000e+00> : vector<32xf32>
    %44 = vector.multi_reduction <add>, %43, %cst_20 [1] : vector<32x128xf32> to vector<32xf32>
    %45 = vector.shape_cast %44 : vector<32xf32> to vector<32x1xf32>
    %cst_21 = arith.constant 1.562500e-02 : f32
    %46 = vector.broadcast %cst_21 : f32 to vector<32x1xf32>
    %47 = arith.mulf %45, %46 : vector<32x1xf32>
    %48 = vector.broadcast %47 : vector<32x1xf32> to vector<32x128xf32>
    %49 = arith.subf %39, %48 : vector<32x128xf32>
    %50 = vector.broadcast %0 : vector<1x128xf32> to vector<32x128xf32>
    %51 = arith.mulf %49, %50 : vector<32x128xf32>
    %52 = arith.mulf %51, %51 : vector<32x128xf32>
    %cst_22 = arith.constant dense<0.000000e+00> : vector<32xf32>
    %53 = vector.multi_reduction <add>, %52, %cst_22 [1] : vector<32x128xf32> to vector<32xf32>
    %54 = vector.shape_cast %53 : vector<32xf32> to vector<32x1xf32>
    %cst_23 = arith.constant 1.562500e-02 : f32
    %55 = vector.broadcast %cst_23 : f32 to vector<32x1xf32>
    %56 = arith.mulf %54, %55 : vector<32x1xf32>
    %cst_24 = arith.constant 9.99999974E-6 : f32
    %57 = vector.broadcast %cst_24 : f32 to vector<32x1xf32>
    %58 = arith.addf %56, %57 : vector<32x1xf32>
    %59 = math.rsqrt %58 : vector<32x1xf32>
    %60 = vector.broadcast %59 : vector<32x1xf32> to vector<32x128xf32>
    %61 = arith.mulf %51, %60 : vector<32x128xf32>
    %62 = vector.broadcast %40 : vector<32x1xf32> to vector<32x128xf32>
    %63 = arith.mulf %61, %62 : vector<32x128xf32>
    %64 = vector.broadcast %41 : vector<32x1xf32> to vector<32x128xf32>
    %65 = arith.addf %63, %64 : vector<32x128xf32>
    %c1 = arith.constant 1 : index
    %c0_25 = arith.constant 0 : index
    %c0_26 = arith.constant 0 : index
    %66 = vector.load %arg4[%c1, %c0_25, %c0_26] : memref<4x32x32xbf16, #tpu.memory_space<vmem>>, vector<1x32x32xbf16>
    %67 = vector.shape_cast %66 : vector<1x32x32xbf16> to vector<32x32xbf16>
    %68 = arith.truncf %65 : vector<32x128xf32> to vector<32x128xbf16>
    %cst_27 = arith.constant dense<0.000000e+00> : vector<32x128xf32>
    %69 = tpu.matmul %67, %68, %cst_27 {dimension_numbers = #tpu.dot_dimension_numbers<[1], [0], [0], [1], [0, 0, 1, 1], [], []>} : vector<32x32xbf16>, vector<32x128xbf16>, vector<32x128xf32> -> vector<32x128xf32>
    %70 = arith.truncf %69 : vector<32x128xf32> to vector<32x128xbf16>
    %cst_28 = arith.constant dense<0.000000e+00> : vector<32x128xf32>
    %71 = tpu.matmul %70, %1, %cst_28 {dimension_numbers = #tpu.dot_dimension_numbers<[1], [0], [0], [1], [0, 0, 1, 1], [], []>} : vector<32x128xbf16>, vector<128x128xbf16>, vector<32x128xf32> -> vector<32x128xf32>
    %c0_29 = arith.constant 0 : index
    %c35 = arith.constant 35 : index
    %72 = vector.load %arg5[%c0_29, %c35] : memref<32x51xf32, #tpu.memory_space<vmem>>, vector<32x1xf32>
    %73 = vector.broadcast %72 : vector<32x1xf32> to vector<32x128xf32>
    %74 = arith.addf %71, %73 : vector<32x128xf32>
    %cst_30 = arith.constant 0.000000e+00 : f32
    %75 = vector.broadcast %cst_30 : f32 to vector<32x128xf32>
    %76 = arith.maximumf %74, %75 : vector<32x128xf32>
    %c0_31 = arith.constant 0 : index
    %c39 = arith.constant 39 : index
    %77 = vector.load %arg5[%c0_31, %c39] : memref<32x51xf32, #tpu.memory_space<vmem>>, vector<32x1xf32>
    %c0_32 = arith.constant 0 : index
    %c43 = arith.constant 43 : index
    %78 = vector.load %arg5[%c0_32, %c43] : memref<32x51xf32, #tpu.memory_space<vmem>>, vector<32x1xf32>
    %79 = vector.broadcast %0 : vector<1x128xf32> to vector<32x128xf32>
    %80 = arith.mulf %76, %79 : vector<32x128xf32>
    %cst_33 = arith.constant dense<0.000000e+00> : vector<32xf32>
    %81 = vector.multi_reduction <add>, %80, %cst_33 [1] : vector<32x128xf32> to vector<32xf32>
    %82 = vector.shape_cast %81 : vector<32xf32> to vector<32x1xf32>
    %cst_34 = arith.constant 1.562500e-02 : f32
    %83 = vector.broadcast %cst_34 : f32 to vector<32x1xf32>
    %84 = arith.mulf %82, %83 : vector<32x1xf32>
    %85 = vector.broadcast %84 : vector<32x1xf32> to vector<32x128xf32>
    %86 = arith.subf %76, %85 : vector<32x128xf32>
    %87 = vector.broadcast %0 : vector<1x128xf32> to vector<32x128xf32>
    %88 = arith.mulf %86, %87 : vector<32x128xf32>
    %89 = arith.mulf %88, %88 : vector<32x128xf32>
    %cst_35 = arith.constant dense<0.000000e+00> : vector<32xf32>
    %90 = vector.multi_reduction <add>, %89, %cst_35 [1] : vector<32x128xf32> to vector<32xf32>
    %91 = vector.shape_cast %90 : vector<32xf32> to vector<32x1xf32>
    %cst_36 = arith.constant 1.562500e-02 : f32
    %92 = vector.broadcast %cst_36 : f32 to vector<32x1xf32>
    %93 = arith.mulf %91, %92 : vector<32x1xf32>
    %cst_37 = arith.constant 9.99999974E-6 : f32
    %94 = vector.broadcast %cst_37 : f32 to vector<32x1xf32>
    %95 = arith.addf %93, %94 : vector<32x1xf32>
    %96 = math.rsqrt %95 : vector<32x1xf32>
    %97 = vector.broadcast %96 : vector<32x1xf32> to vector<32x128xf32>
    %98 = arith.mulf %88, %97 : vector<32x128xf32>
    %99 = vector.broadcast %77 : vector<32x1xf32> to vector<32x128xf32>
    %100 = arith.mulf %98, %99 : vector<32x128xf32>
    %101 = vector.broadcast %78 : vector<32x1xf32> to vector<32x128xf32>
    %102 = arith.addf %100, %101 : vector<32x128xf32>
    %c2 = arith.constant 2 : index
    %c0_38 = arith.constant 0 : index
    %c0_39 = arith.constant 0 : index
    %103 = vector.load %arg4[%c2, %c0_38, %c0_39] : memref<4x32x32xbf16, #tpu.memory_space<vmem>>, vector<1x32x32xbf16>
    %104 = vector.shape_cast %103 : vector<1x32x32xbf16> to vector<32x32xbf16>
    %105 = arith.truncf %102 : vector<32x128xf32> to vector<32x128xbf16>
    %cst_40 = arith.constant dense<0.000000e+00> : vector<32x128xf32>
    %106 = tpu.matmul %104, %105, %cst_40 {dimension_numbers = #tpu.dot_dimension_numbers<[1], [0], [0], [1], [0, 0, 1, 1], [], []>} : vector<32x32xbf16>, vector<32x128xbf16>, vector<32x128xf32> -> vector<32x128xf32>
    %107 = arith.truncf %106 : vector<32x128xf32> to vector<32x128xbf16>
    %cst_41 = arith.constant dense<0.000000e+00> : vector<32x128xf32>
    %108 = tpu.matmul %107, %1, %cst_41 {dimension_numbers = #tpu.dot_dimension_numbers<[1], [0], [0], [1], [0, 0, 1, 1], [], []>} : vector<32x128xbf16>, vector<128x128xbf16>, vector<32x128xf32> -> vector<32x128xf32>
    %c0_42 = arith.constant 0 : index
    %c36 = arith.constant 36 : index
    %109 = vector.load %arg5[%c0_42, %c36] : memref<32x51xf32, #tpu.memory_space<vmem>>, vector<32x1xf32>
    %110 = vector.broadcast %109 : vector<32x1xf32> to vector<32x128xf32>
    %111 = arith.addf %108, %110 : vector<32x128xf32>
    %cst_43 = arith.constant 0.000000e+00 : f32
    %112 = vector.broadcast %cst_43 : f32 to vector<32x128xf32>
    %113 = arith.maximumf %111, %112 : vector<32x128xf32>
    %c0_44 = arith.constant 0 : index
    %c40 = arith.constant 40 : index
    %114 = vector.load %arg5[%c0_44, %c40] : memref<32x51xf32, #tpu.memory_space<vmem>>, vector<32x1xf32>
    %c0_45 = arith.constant 0 : index
    %c44 = arith.constant 44 : index
    %115 = vector.load %arg5[%c0_45, %c44] : memref<32x51xf32, #tpu.memory_space<vmem>>, vector<32x1xf32>
    %116 = vector.broadcast %0 : vector<1x128xf32> to vector<32x128xf32>
    %117 = arith.mulf %113, %116 : vector<32x128xf32>
    %cst_46 = arith.constant dense<0.000000e+00> : vector<32xf32>
    %118 = vector.multi_reduction <add>, %117, %cst_46 [1] : vector<32x128xf32> to vector<32xf32>
    %119 = vector.shape_cast %118 : vector<32xf32> to vector<32x1xf32>
    %cst_47 = arith.constant 1.562500e-02 : f32
    %120 = vector.broadcast %cst_47 : f32 to vector<32x1xf32>
    %121 = arith.mulf %119, %120 : vector<32x1xf32>
    %122 = vector.broadcast %121 : vector<32x1xf32> to vector<32x128xf32>
    %123 = arith.subf %113, %122 : vector<32x128xf32>
    %124 = vector.broadcast %0 : vector<1x128xf32> to vector<32x128xf32>
    %125 = arith.mulf %123, %124 : vector<32x128xf32>
    %126 = arith.mulf %125, %125 : vector<32x128xf32>
    %cst_48 = arith.constant dense<0.000000e+00> : vector<32xf32>
    %127 = vector.multi_reduction <add>, %126, %cst_48 [1] : vector<32x128xf32> to vector<32xf32>
    %128 = vector.shape_cast %127 : vector<32xf32> to vector<32x1xf32>
    %cst_49 = arith.constant 1.562500e-02 : f32
    %129 = vector.broadcast %cst_49 : f32 to vector<32x1xf32>
    %130 = arith.mulf %128, %129 : vector<32x1xf32>
    %cst_50 = arith.constant 9.99999974E-6 : f32
    %131 = vector.broadcast %cst_50 : f32 to vector<32x1xf32>
    %132 = arith.addf %130, %131 : vector<32x1xf32>
    %133 = math.rsqrt %132 : vector<32x1xf32>
    %134 = vector.broadcast %133 : vector<32x1xf32> to vector<32x128xf32>
    %135 = arith.mulf %125, %134 : vector<32x128xf32>
    %136 = vector.broadcast %114 : vector<32x1xf32> to vector<32x128xf32>
    %137 = arith.mulf %135, %136 : vector<32x128xf32>
    %138 = vector.broadcast %115 : vector<32x1xf32> to vector<32x128xf32>
    %139 = arith.addf %137, %138 : vector<32x128xf32>
    %c3 = arith.constant 3 : index
    %c0_51 = arith.constant 0 : index
    %c0_52 = arith.constant 0 : index
    %140 = vector.load %arg4[%c3, %c0_51, %c0_52] : memref<4x32x32xbf16, #tpu.memory_space<vmem>>, vector<1x32x32xbf16>
    %141 = vector.shape_cast %140 : vector<1x32x32xbf16> to vector<32x32xbf16>
    %142 = arith.truncf %139 : vector<32x128xf32> to vector<32x128xbf16>
    %cst_53 = arith.constant dense<0.000000e+00> : vector<32x128xf32>
    %143 = tpu.matmul %141, %142, %cst_53 {dimension_numbers = #tpu.dot_dimension_numbers<[1], [0], [0], [1], [0, 0, 1, 1], [], []>} : vector<32x32xbf16>, vector<32x128xbf16>, vector<32x128xf32> -> vector<32x128xf32>
    %144 = arith.truncf %143 : vector<32x128xf32> to vector<32x128xbf16>
    %cst_54 = arith.constant dense<0.000000e+00> : vector<32x128xf32>
    %145 = tpu.matmul %144, %1, %cst_54 {dimension_numbers = #tpu.dot_dimension_numbers<[1], [0], [0], [1], [0, 0, 1, 1], [], []>} : vector<32x128xbf16>, vector<128x128xbf16>, vector<32x128xf32> -> vector<32x128xf32>
    %c0_55 = arith.constant 0 : index
    %c37 = arith.constant 37 : index
    %146 = vector.load %arg5[%c0_55, %c37] : memref<32x51xf32, #tpu.memory_space<vmem>>, vector<32x1xf32>
    %147 = vector.broadcast %146 : vector<32x1xf32> to vector<32x128xf32>
    %148 = arith.addf %145, %147 : vector<32x128xf32>
    %cst_56 = arith.constant 0.000000e+00 : f32
    %149 = vector.broadcast %cst_56 : f32 to vector<32x128xf32>
    %150 = arith.maximumf %148, %149 : vector<32x128xf32>
    %c0_57 = arith.constant 0 : index
    %c41 = arith.constant 41 : index
    %151 = vector.load %arg5[%c0_57, %c41] : memref<32x51xf32, #tpu.memory_space<vmem>>, vector<32x1xf32>
    %c0_58 = arith.constant 0 : index
    %c45 = arith.constant 45 : index
    %152 = vector.load %arg5[%c0_58, %c45] : memref<32x51xf32, #tpu.memory_space<vmem>>, vector<32x1xf32>
    %153 = vector.broadcast %0 : vector<1x128xf32> to vector<32x128xf32>
    %154 = arith.mulf %150, %153 : vector<32x128xf32>
    %cst_59 = arith.constant dense<0.000000e+00> : vector<32xf32>
    %155 = vector.multi_reduction <add>, %154, %cst_59 [1] : vector<32x128xf32> to vector<32xf32>
    %156 = vector.shape_cast %155 : vector<32xf32> to vector<32x1xf32>
    %cst_60 = arith.constant 1.562500e-02 : f32
    %157 = vector.broadcast %cst_60 : f32 to vector<32x1xf32>
    %158 = arith.mulf %156, %157 : vector<32x1xf32>
    %159 = vector.broadcast %158 : vector<32x1xf32> to vector<32x128xf32>
    %160 = arith.subf %150, %159 : vector<32x128xf32>
    %161 = vector.broadcast %0 : vector<1x128xf32> to vector<32x128xf32>
    %162 = arith.mulf %160, %161 : vector<32x128xf32>
    %163 = arith.mulf %162, %162 : vector<32x128xf32>
    %cst_61 = arith.constant dense<0.000000e+00> : vector<32xf32>
    %164 = vector.multi_reduction <add>, %163, %cst_61 [1] : vector<32x128xf32> to vector<32xf32>
    %165 = vector.shape_cast %164 : vector<32xf32> to vector<32x1xf32>
    %cst_62 = arith.constant 1.562500e-02 : f32
    %166 = vector.broadcast %cst_62 : f32 to vector<32x1xf32>
    %167 = arith.mulf %165, %166 : vector<32x1xf32>
    %cst_63 = arith.constant 9.99999974E-6 : f32
    %168 = vector.broadcast %cst_63 : f32 to vector<32x1xf32>
    %169 = arith.addf %167, %168 : vector<32x1xf32>
    %170 = math.rsqrt %169 : vector<32x1xf32>
    %171 = vector.broadcast %170 : vector<32x1xf32> to vector<32x128xf32>
    %172 = arith.mulf %162, %171 : vector<32x128xf32>
    %173 = vector.broadcast %151 : vector<32x1xf32> to vector<32x128xf32>
    %174 = arith.mulf %172, %173 : vector<32x128xf32>
    %175 = vector.broadcast %152 : vector<32x1xf32> to vector<32x128xf32>
    %176 = arith.addf %174, %175 : vector<32x128xf32>
    %c0_64 = arith.constant 0 : index
    %c0_65 = arith.constant 0 : index
    %177 = vector.load %arg2[%c0_64, %c0_65] : memref<128x2xf32, #tpu.memory_space<vmem>>, vector<128x2xf32>
    %cst_66 = arith.constant dense<0.000000e+00> : vector<32x2xf32>
    %178 = tpu.matmul %176, %177, %cst_66 {dimension_numbers = #tpu.dot_dimension_numbers<[1], [0], [0], [1], [0, 0, 1, 1], [], []>} : vector<32x128xf32>, vector<128x2xf32>, vector<32x2xf32> -> vector<32x2xf32>
    %c0_67 = arith.constant 0 : index
    %c0_68 = arith.constant 0 : index
    %179 = vector.load %arg5[%c0_67, %c0_68] : memref<32x51xf32, #tpu.memory_space<vmem>>, vector<32x32xf32>
    %cst_69 = arith.constant dense<0.000000e+00> : vector<32x2xf32>
    %180 = tpu.matmul %179, %178, %cst_69 {dimension_numbers = #tpu.dot_dimension_numbers<[1], [0], [0], [1], [0, 0, 1, 1], [], []>} : vector<32x32xf32>, vector<32x2xf32>, vector<32x2xf32> -> vector<32x2xf32>
    %c0_70 = arith.constant 0 : index
    %c46 = arith.constant 46 : index
    %181 = vector.load %arg5[%c0_70, %c46] : memref<32x51xf32, #tpu.memory_space<vmem>>, vector<32x1xf32>
    %182 = vector.broadcast %181 : vector<32x1xf32> to vector<32x2xf32>
    %183 = arith.addf %180, %182 : vector<32x2xf32>
    %cst_71 = arith.constant 0.000000e+00 : f32
    %184 = vector.broadcast %cst_71 : f32 to vector<32x2xf32>
    %185 = arith.maximumf %183, %184 : vector<32x2xf32>
    %cst_72 = arith.constant dense<0.000000e+00> : vector<32xf32>
    %186 = vector.multi_reduction <add>, %185, %cst_72 [1] : vector<32x2xf32> to vector<32xf32>
    %187 = vector.shape_cast %186 : vector<32xf32> to vector<32x1xf32>
    %cst_73 = arith.constant 5.000000e-01 : f32
    %188 = vector.broadcast %cst_73 : f32 to vector<32x1xf32>
    %189 = arith.mulf %187, %188 : vector<32x1xf32>
    %190 = vector.broadcast %189 : vector<32x1xf32> to vector<32x2xf32>
    %191 = arith.subf %185, %190 : vector<32x2xf32>
    %192 = arith.mulf %191, %191 : vector<32x2xf32>
    %cst_74 = arith.constant dense<0.000000e+00> : vector<32xf32>
    %193 = vector.multi_reduction <add>, %192, %cst_74 [1] : vector<32x2xf32> to vector<32xf32>
    %194 = vector.shape_cast %193 : vector<32xf32> to vector<32x1xf32>
    %cst_75 = arith.constant 5.000000e-01 : f32
    %195 = vector.broadcast %cst_75 : f32 to vector<32x1xf32>
    %196 = arith.mulf %194, %195 : vector<32x1xf32>
    %cst_76 = arith.constant 9.99999974E-6 : f32
    %197 = vector.broadcast %cst_76 : f32 to vector<32x1xf32>
    %198 = arith.addf %196, %197 : vector<32x1xf32>
    %199 = math.rsqrt %198 : vector<32x1xf32>
    %200 = vector.broadcast %199 : vector<32x1xf32> to vector<32x2xf32>
    %201 = arith.mulf %191, %200 : vector<32x2xf32>
    %c0_77 = arith.constant 0 : index
    %c47 = arith.constant 47 : index
    %202 = vector.load %arg5[%c0_77, %c47] : memref<32x51xf32, #tpu.memory_space<vmem>>, vector<32x1xf32>
    %203 = vector.broadcast %202 : vector<32x1xf32> to vector<32x2xf32>
    %204 = arith.mulf %201, %203 : vector<32x2xf32>
    %c0_78 = arith.constant 0 : index
    %c48 = arith.constant 48 : index
    %205 = vector.load %arg5[%c0_78, %c48] : memref<32x51xf32, #tpu.memory_space<vmem>>, vector<32x1xf32>
    %206 = vector.broadcast %205 : vector<32x1xf32> to vector<32x2xf32>
    %207 = arith.addf %204, %206 : vector<32x2xf32>
    %c0_79 = arith.constant 0 : index
    %c49 = arith.constant 49 : index
    %208 = vector.load %arg5[%c0_79, %c49] : memref<32x51xf32, #tpu.memory_space<vmem>>, vector<32x1xf32>
    %209 = vector.broadcast %208 : vector<32x1xf32> to vector<32x2xf32>
    %210 = arith.mulf %207, %209 : vector<32x2xf32>
    %cst_80 = arith.constant dense<0.000000e+00> : vector<2xf32>
    %211 = vector.multi_reduction <add>, %210, %cst_80 [0] : vector<32x2xf32> to vector<2xf32>
    %212 = vector.shape_cast %211 : vector<2xf32> to vector<1x2xf32>
    %c0_81 = arith.constant 0 : index
    %c50 = arith.constant 50 : index
    %213 = vector.load %arg5[%c0_81, %c50] : memref<32x51xf32, #tpu.memory_space<vmem>>, vector<1x1xf32>
    %214 = vector.broadcast %213 : vector<1x1xf32> to vector<1x2xf32>
    %215 = arith.addf %212, %214 : vector<1x2xf32>
    %c0_82 = arith.constant 0 : index
    %c0_83 = arith.constant 0 : index
    %216 = vector.load %arg6[%c0_82, %c0_83] : memref<1x2xf32, #tpu.memory_space<vmem>>, vector<1x2xf32>
    tpu.vector_store %arg6[%c0_82, %c0_83], %215 {strides = array<i32>} : memref<1x2xf32, #tpu.memory_space<vmem>>, vector<1x2xf32>,
    return
  }
}

</mosaic_0001>

<llo_original>
// kernel: tpu_custom_call.1
$region0: #{tpu_custom_call.1}
  #allocation0 [shape = 'u32[]', space=smem, size = 0x4, offset = 0x4, fixed_abs, tag = 'smem constant byte address 0x4 - core index']
  #allocation1 [shape = 'u32[144,128]{1,0:T(1,128)}', space=vmem, size = 0x12000, scoped, tag = 'internal scratch']
  %s0 = inlined_call_operand.hbm [shape: f32[32,128], index: 0, kind: input, shape index: {}]
  %s1 = inlined_call_operand.vmem [shape: bf16[128,128], index: 1, kind: input, shape index: {}]
  %s2 = inlined_call_operand.vmem [shape: f32[128,2], index: 2, kind: input, shape index: {}]
  %s3 = inlined_call_operand.vmem [shape: f32[1,128], index: 3, kind: input, shape index: {}]
  %s4 = inlined_call_operand.vmem [shape: bf16[4,32,32], index: 4, kind: input, shape index: {}]
  %s5 = inlined_call_operand.hbm [shape: f32[32,51], index: 5, kind: input, shape index: {}]
  %s6 = inlined_call_operand.hbm [shape: f32[1,2], index: 6, kind: output, shape index: {}]
  %s7 = sld [smem:[#allocation0]]
  $region42: #{tpu_custom_call.1} parent=0
    _
  %s9 = ssub.s32 1, %s7
  %s10 = scalar_select 0, %s9, %s7
  $region1: #{tpu_custom_call.1} parent=0
    #allocation2 [shape = 'u8[16384]{0}', space=vmem, size = 0x4000, scoped, tag = 'input window, operand 0, single buffered']
    #allocation3 [shape = 's32[1]{0}', space=sflag, size = 0x4, scoped, tag = 'scoped memory for tpu_custom_call.1']
    #allocation4 [shape = 's32[1]{0}', space=sflag, size = 0x4, scoped, tag = 'scoped memory for tpu_custom_call.1']
    #allocation5 [shape = 'u8[16384]{0}', space=vmem, size = 0x4000, scoped, tag = 'input window, operand 5, single buffered']
    #allocation6 [shape = 's32[1]{0}', space=sflag, size = 0x4, scoped, tag = 'scoped memory for tpu_custom_call.1']
    #allocation7 [shape = 'u8[512]{0}', space=vmem, size = 0x400, scoped, tag = 'output window, operand 0, single buffered']
    %11 = vsyncpa [#allocation3], 0
    %12 = vsyncpa [#allocation6], 0
    %13 = vsyncpa [#allocation4], 0
    // Predicated region
    $region2: #{tpu_custom_call.1} parent=1 // pred_check
      _
    $region3: #{tpu_custom_call.1} parent=1 // pred_check_branch
      %15 = sbr.rel (0) target = $region5
    $region4: #{tpu_custom_call.1} parent=1 // pred_region
      %s17 = ssub.s32 512, 512
      %18 = vsyncadd [#allocation3], %s17
      %s19 = sshll.u32 [#allocation2], 4
      %s20 = int_to_ptr.vmem [resolvable:$true] %s19
      %25 = dma.hbm_to_vmem [thread:$0]  %s0, 512, %s20, [#allocation3], 128, 128, 8
    $region5: #{tpu_custom_call.1} parent=1 // pred_fallthru
      _
    // Predicated region
    $region6: #{tpu_custom_call.1} parent=1 // pred_check
      _
    $region7: #{tpu_custom_call.1} parent=1 // pred_check_branch
      %27 = sbr.rel (0) target = $region9
    $region8: #{tpu_custom_call.1} parent=1 // pred_region
      _
    $region9: #{tpu_custom_call.1} parent=1 // pred_fallthru
      _
    // Predicated region
    $region10: #{tpu_custom_call.1} parent=1 // pred_check
      _
    $region11: #{tpu_custom_call.1} parent=1 // pred_check_branch
      %29 = sbr.rel (0) target = $region13
    $region12: #{tpu_custom_call.1} parent=1 // pred_region
      _
    $region13: #{tpu_custom_call.1} parent=1 // pred_fallthru
      _
    // Predicated region
    $region14: #{tpu_custom_call.1} parent=1 // pred_check
      _
    $region15: #{tpu_custom_call.1} parent=1 // pred_check_branch
      %31 = sbr.rel (0) target = $region17
    $region16: #{tpu_custom_call.1} parent=1 // pred_region
      _
    $region17: #{tpu_custom_call.1} parent=1 // pred_fallthru
      _
    // Predicated region
    $region18: #{tpu_custom_call.1} parent=1 // pred_check
      _
    $region19: #{tpu_custom_call.1} parent=1 // pred_check_branch
      %33 = sbr.rel (0) target = $region21
    $region20: #{tpu_custom_call.1} parent=1 // pred_region
      _
    $region21: #{tpu_custom_call.1} parent=1 // pred_fallthru
      _
    // Predicated region
    $region22: #{tpu_custom_call.1} parent=1 // pred_check
      _
    $region23: #{tpu_custom_call.1} parent=1 // pred_check_branch
      %35 = sbr.rel (0) target = $region25
    $region24: #{tpu_custom_call.1} parent=1 // pred_region
      %s37 = ssub.s32 512, 512
      %38 = vsyncadd [#allocation6], %s37
      %s39 = sshll.u32 [#allocation5], 4
      %s40 = int_to_ptr.vmem [resolvable:$true] %s39
      %45 = dma.hbm_to_vmem [thread:$0]  %s5, 512, %s40, [#allocation6], 128, 128, 8
    $region25: #{tpu_custom_call.1} parent=1 // pred_fallthru
      _
    // Predicated region
    $region26: #{tpu_custom_call.1} parent=1 // pred_check
      _
    $region27: #{tpu_custom_call.1} parent=1 // pred_check_branch
      %47 = sbr.rel (0) target = $region29
    $region28: #{tpu_custom_call.1} parent=1 // pred_region
      %48 = dma.done [#allocation3], 512
    $region29: #{tpu_custom_call.1} parent=1 // pred_fallthru
      _
    // Predicated region
    $region30: #{tpu_custom_call.1} parent=1 // pred_check
      _
    $region31: #{tpu_custom_call.1} parent=1 // pred_check_branch
      %50 = sbr.rel (0) target = $region33
    $region32: #{tpu_custom_call.1} parent=1 // pred_region
      %51 = dma.done [#allocation6], 512
    $region33: #{tpu_custom_call.1} parent=1 // pred_fallthru
      _
    %v53 = vld [vmem:[%s3] sm:$0x1]
    %v54 = vld [vmem:[%s1] sm:$0xf]
    %v55 = vld [vmem:[%s1 + $0x4] sm:$0xf]
    %v56 = vld [vmem:[%s1 + $0x8] sm:$0xf]
    %v57 = vld [vmem:[%s1 + $0xc] sm:$0xf]
    %v58 = vld [vmem:[%s1 + $0x10] sm:$0xf]
    %v59 = vld [vmem:[%s1 + $0x14] sm:$0xf]
    %v60 = vld [vmem:[%s1 + $0x18] sm:$0xf]
    %v61 = vld [vmem:[%s1 + $0x1c] sm:$0xf]
    %v62 = vld [vmem:[%s1 + $0x20] sm:$0xf]
    %v63 = vld [vmem:[%s1 + $0x24] sm:$0xf]
    %v64 = vld [vmem:[%s1 + $0x28] sm:$0xf]
    %v65 = vld [vmem:[%s1 + $0x2c] sm:$0xf]
    %v66 = vld [vmem:[%s1 + $0x30] sm:$0xf]
    %v67 = vld [vmem:[%s1 + $0x34] sm:$0xf]
    %v68 = vld [vmem:[%s1 + $0x38] sm:$0xf]
    %v69 = vld [vmem:[%s1 + $0x3c] sm:$0xf]
    %v70 = vld [vmem:[#allocation2] sm:$0xff]
    %v71 = vld [vmem:[#allocation2 + $0x8] sm:$0xff]
    %v72 = vld [vmem:[#allocation2 + $0x10] sm:$0xff]
    %v73 = vld [vmem:[#allocation2 + $0x18] sm:$0xff]
    %v74 = vld [vmem:[#allocation5] sm:$0xff]
    %v75 = vld [vmem:[#allocation5 + $0x8] sm:$0xff]
    %v76 = vld [vmem:[#allocation5 + $0x10] sm:$0xff]
    %v77 = vld [vmem:[#allocation5 + $0x18] sm:$0xff]
    %v79 = vlaneseq
    %v80 = vshrl.u32 %v79, 7
    %v81 = vsub.s32 0, %v80
    %v82 = vrot.slane %v53, %v81
    %v84 = vmul.f32 %v70, %v82
    %v85 = vmul.f32 %v71, %v82
    %v86 = vmul.f32 %v72, %v82
    %v87 = vmul.f32 %v73, %v82
    %88 = vadd.xlane.f32.xlu0 %v84
    %v89 = vpop.xlane.xlu0 %88
    %90 = vadd.xlane.f32.xlu0 %v85
    %v91 = vpop.xlane.xlu0 %90
    %92 = vadd.xlane.f32.xlu0 %v86
    %v93 = vpop.xlane.xlu0 %92
    %94 = vadd.xlane.f32.xlu0 %v87
    %v95 = vpop.xlane.xlu0 %94
    %v96 = vmul.f32 %v89, 0.015625
    %v97 = vmul.f32 %v91, 0.015625
    %v98 = vmul.f32 %v93, 0.015625
    %v99 = vmul.f32 %v95, 0.015625
    %v100 = vsub.f32 %v70, %v96
    %v101 = vsub.f32 %v71, %v97
    %v102 = vsub.f32 %v72, %v98
    %v103 = vsub.f32 %v73, %v99
    %v104 = vmul.f32 %v100, %v82
    %v105 = vmul.f32 %v101, %v82
    %v106 = vmul.f32 %v102, %v82
    %v107 = vmul.f32 %v103, %v82
    %v108 = vmul.f32 %v104, %v104
    %v109 = vmul.f32 %v105, %v105
    %v110 = vmul.f32 %v106, %v106
    %v111 = vmul.f32 %v107, %v107
    %112 = vadd.xlane.f32.xlu0 %v108
    %v113 = vpop.xlane.xlu0 %112
    %114 = vadd.xlane.f32.xlu0 %v109
    %v115 = vpop.xlane.xlu0 %114
    %116 = vadd.xlane.f32.xlu0 %v110
    %v117 = vpop.xlane.xlu0 %116
    %118 = vadd.xlane.f32.xlu0 %v111
    %v119 = vpop.xlane.xlu0 %118
    %v120 = vmul.f32 %v113, 0.015625
    %v121 = vmul.f32 %v115, 0.015625
    %v122 = vmul.f32 %v117, 0.015625
    %v123 = vmul.f32 %v119, 0.015625
    %v124 = vadd.f32 %v120, 1e-05
    %v125 = vadd.f32 %v121, 1e-05
    %v126 = vadd.f32 %v122, 1e-05
    %v127 = vadd.f32 %v123, 1e-05
    %v128 = vrsqrt.pop %v124
    %v129 = vrsqrt.pop %v125
    %v130 = vrsqrt.pop %v126
    %v131 = vrsqrt.pop %v127
    %v132 = vmul.f32 %v104, %v128
    %v133 = vmul.f32 %v105, %v129
    %v134 = vmul.f32 %v106, %v130
    %v135 = vmul.f32 %v107, %v131
    %137 = vset.pattern.permute.xlu0 32
    %138 = vperm.xlu0 %137, %v74
    %v139 = vpop.permute.xlu0 %138
    %142 = vset.pattern.permute.xlu0 32
    %143 = vperm.xlu0 %142, %v75
    %v144 = vpop.permute.xlu0 %143
    %147 = vset.pattern.permute.xlu0 32
    %148 = vperm.xlu0 %147, %v76
    %v149 = vpop.permute.xlu0 %148
    %152 = vset.pattern.permute.xlu0 32
    %153 = vperm.xlu0 %152, %v77
    %v154 = vpop.permute.xlu0 %153
    %v156 = vmul.f32 %v132, %v139
    %v157 = vmul.f32 %v133, %v144
    %v158 = vmul.f32 %v134, %v149
    %v159 = vmul.f32 %v135, %v154
    %160 = vset.pattern.permute.xlu0 33
    %161 = vperm.xlu0 %160, %v74
    %v162 = vpop.permute.xlu0 %161
    %164 = vset.pattern.permute.xlu0 33
    %165 = vperm.xlu0 %164, %v75
    %v166 = vpop.permute.xlu0 %165
    %168 = vset.pattern.permute.xlu0 33
    %169 = vperm.xlu0 %168, %v76
    %v170 = vpop.permute.xlu0 %169
    %172 = vset.pattern.permute.xlu0 33
    %173 = vperm.xlu0 %172, %v77
    %v174 = vpop.permute.xlu0 %173
    %v176 = vadd.f32 %v156, %v162
    %v177 = vadd.f32 %v157, %v166
    %v178 = vadd.f32 %v158, %v170
    %v179 = vadd.f32 %v159, %v174
    %v180 = vld [vmem:[%s4] sm:$0xf]
    %v181 = vld [vmem:[%s4 + $0x4] sm:$0xf]
    %v182 = vld [vmem:[%s4 + $0x8] sm:$0xf]
    %v183 = vld [vmem:[%s4 + $0xc] sm:$0xf]
    %v184 = vpack.c.bf16 %v177, %v176
    %v185 = vpack.c.bf16 %v179, %v178
    %v190 = vunpack.c.l.b16 %v180
    %v191 = vunpack.c.l.b16 %v181
    %v192 = vunpack.c.l.b16 %v182
    %v193 = vunpack.c.l.b16 %v183
    %v194 = vpack.c.b16 %v191, %v190
    %v195 = vpack.c.b16 %v193, %v192
    %vm196 = vcmask 261120
    %v198 = vsel %vm196, %v194, 0
    %v201 = vsel %vm196, %v195, 0
    %203 = vmatprep.subr.bf16.mxu0 0
    %204 = vmatpush1.bf16.msra.mxu0 %v184
    %205 = vmatprep.subr.bf16.mxu0 0
    %206 = vmatpush1.bf16.msra.mxu0 %v185
    %207 = vmatprep.subr.bf16.mxu0 0
    %208 = vmatpush1.bf16.msra.mxu0 0
    %209 = vmatprep.subr.bf16.mxu0 0
    %210 = vmatpush1.bf16.msra.mxu0 0
    %211 = vmatprep.subr.bf16.mxu0 0
    %212 = vmatpush1.bf16.msra.mxu0 0
    %213 = vmatprep.subr.bf16.mxu0 0
    %214 = vmatpush1.bf16.msra.mxu0 0
    %215 = vmatprep.subr.bf16.mxu0 0
    %216 = vmatpush1.bf16.msra.mxu0 0
    %217 = vmatprep.subr.bf16.mxu0 0
    %218 = vmatpush1.bf16.msra.mxu0 0
    %219 = vmatprep.subr.bf16.mxu0 0
    %220 = vmatpush1.bf16.msra.mxu0 0
    %221 = vmatprep.subr.bf16.mxu0 0
    %222 = vmatpush1.bf16.msra.mxu0 0
    %223 = vmatprep.subr.bf16.mxu0 0
    %224 = vmatpush1.bf16.msra.mxu0 0
    %225 = vmatprep.subr.bf16.mxu0 0
    %226 = vmatpush1.bf16.msra.mxu0 0
    %227 = vmatprep.subr.bf16.mxu0 0
    %228 = vmatpush1.bf16.msra.mxu0 0
    %229 = vmatprep.subr.bf16.mxu0 0
    %230 = vmatpush1.bf16.msra.mxu0 0
    %231 = vmatprep.subr.bf16.mxu0 0
    %232 = vmatpush1.bf16.msra.mxu0 0
    %233 = vmatprep.subr.bf16.mxu0 0
    %234 = vmatpush1.bf16.msra.mxu0 0
    %235 = vmatprep.mubr.bf16.mxu0 0
    %236 = vmatmul.mubr.bf16.gmra.mrb[0].mxu0 %v198
    %v237 = vpop.f32.mrb[0].mxu0
    %v238 = vadd.f32 0.0, %v237
    %v239 = vpop.f32.mrb[0].mxu0
    %v240 = vpop.f32.mrb[0].mxu0
    %v241 = vadd.f32 0.0, %v240
    %v242 = vpop.f32.mrb[0].mxu0
    %243 = vmatprep.mubr.bf16.mxu0 0
    %244 = vmatmul.mubr.bf16.gmra.mrb[0].mxu0 %v201
    %v245 = vpop.f32.mrb[0].mxu0
    %v246 = vadd.f32 0.0, %v245
    %v247 = vpop.f32.mrb[0].mxu0
    %v248 = vpop.f32.mrb[0].mxu0
    %v249 = vadd.f32 0.0, %v248
    %v250 = vpop.f32.mrb[0].mxu0
    %251 = vdwg.mxu0
    %v252 = vpack.c.bf16 %v241, %v238
    %v253 = vpack.c.bf16 %v249, %v246
    %254 = vset.pattern.permute.xlu0 34
    %255 = vperm.xlu0 %254, %v74
    %v256 = vpop.permute.xlu0 %255
    %258 = vset.pattern.permute.xlu0 34
    %259 = vperm.xlu0 %258, %v75
    %v260 = vpop.permute.xlu0 %259
    %262 = vset.pattern.permute.xlu0 34
    %263 = vperm.xlu0 %262, %v76
    %v264 = vpop.permute.xlu0 %263
    %266 = vset.pattern.permute.xlu0 34
    %267 = vperm.xlu0 %266, %v77
    %v268 = vpop.permute.xlu0 %267
    %v286 = vunpack.c.l.b16 %v54
    %v287 = vunpack.c.l.b16 %v55
    %v288 = vunpack.c.l.b16 %v56
    %v289 = vunpack.c.l.b16 %v57
    %v290 = vunpack.c.l.b16 %v58
    %v291 = vunpack.c.l.b16 %v59
    %v292 = vunpack.c.l.b16 %v60
    %v293 = vunpack.c.l.b16 %v61
    %v294 = vunpack.c.l.b16 %v62
    %v295 = vunpack.c.l.b16 %v63
    %v296 = vunpack.c.l.b16 %v64
    %v297 = vunpack.c.l.b16 %v65
    %v298 = vunpack.c.l.b16 %v66
    %v299 = vunpack.c.l.b16 %v67
    %v300 = vunpack.c.l.b16 %v68
    %v301 = vunpack.c.l.b16 %v69
    %v302 = vpack.c.b16 %v287, %v286
    %v303 = vpack.c.b16 %v289, %v288
    %v304 = vpack.c.b16 %v291, %v290
    %v305 = vpack.c.b16 %v293, %v292
    %v306 = vpack.c.b16 %v295, %v294
    %v307 = vpack.c.b16 %v297, %v296
    %v308 = vpack.c.b16 %v299, %v298
    %v309 = vpack.c.b16 %v301, %v300
    %318 = vmatprep.subr.bf16.mxu0 0
    %319 = vmatpush1.bf16.msra.mxu0 %v302
    %320 = vmatprep.subr.bf16.mxu0 0
    %321 = vmatpush1.bf16.msra.mxu0 %v303
    %322 = vmatprep.subr.bf16.mxu0 0
    %323 = vmatpush1.bf16.msra.mxu0 %v304
    %324 = vmatprep.subr.bf16.mxu0 0
    %325 = vmatpush1.bf16.msra.mxu0 %v305
    %326 = vmatprep.subr.bf16.mxu0 0
    %327 = vmatpush1.bf16.msra.mxu0 %v306
    %328 = vmatprep.subr.bf16.mxu0 0
    %329 = vmatpush1.bf16.msra.mxu0 %v307
    %330 = vmatprep.subr.bf16.mxu0 0
    %331 = vmatpush1.bf16.msra.mxu0 %v308
    %332 = vmatprep.subr.bf16.mxu0 0
    %333 = vmatpush1.bf16.msra.mxu0 %v309
    %334 = vmatprep.subr.bf16.mxu0 0
    %335 = vmatpush1.bf16.msra.mxu0 0
    %336 = vmatprep.subr.bf16.mxu0 0
    %337 = vmatpush1.bf16.msra.mxu0 0
    %338 = vmatprep.subr.bf16.mxu0 0
    %339 = vmatpush1.bf16.msra.mxu0 0
    %340 = vmatprep.subr.bf16.mxu0 0
    %341 = vmatpush1.bf16.msra.mxu0 0
    %342 = vmatprep.subr.bf16.mxu0 0
    %343 = vmatpush1.bf16.msra.mxu0 0
    %344 = vmatprep.subr.bf16.mxu0 0
    %345 = vmatpush1.bf16.msra.mxu0 0
    %346 = vmatprep.subr.bf16.mxu0 0
    %347 = vmatpush1.bf16.msra.mxu0 0
    %348 = vmatprep.subr.bf16.mxu0 0
    %349 = vmatpush1.bf16.msra.mxu0 0
    %350 = vmatprep.mubr.bf16.mxu0 0
    %351 = vmatmul.mubr.bf16.gmra.mrb[0].mxu0 %v252
    %v352 = vpop.f32.mrb[0].mxu0
    %v353 = vadd.f32 %v256, %v352
    %v354 = vpop.f32.mrb[0].mxu0
    %v355 = vpop.f32.mrb[0].mxu0
    %v356 = vadd.f32 %v260, %v355
    %v357 = vpop.f32.mrb[0].mxu0
    %358 = vmatprep.mubr.bf16.mxu0 0
    %359 = vmatmul.mubr.bf16.gmra.mrb[0].mxu0 %v253
    %v360 = vpop.f32.mrb[0].mxu0
    %v361 = vadd.f32 %v264, %v360
    %v362 = vpop.f32.mrb[0].mxu0
    %v363 = vpop.f32.mrb[0].mxu0
    %v364 = vadd.f32 %v268, %v363
    %v365 = vpop.f32.mrb[0].mxu0
    %366 = vdwg.mxu0
    %v367 = vmax.f32 %v353, 0.0
    %v368 = vmax.f32 %v356, 0.0
    %v369 = vmax.f32 %v361, 0.0
    %v370 = vmax.f32 %v364, 0.0
    %v371 = vmul.f32 %v367, %v82
    %v372 = vmul.f32 %v368, %v82
    %v373 = vmul.f32 %v369, %v82
    %v374 = vmul.f32 %v370, %v82
    %375 = vadd.xlane.f32.xlu0 %v371
    %v376 = vpop.xlane.xlu0 %375
    %377 = vadd.xlane.f32.xlu0 %v372
    %v378 = vpop.xlane.xlu0 %377
    %379 = vadd.xlane.f32.xlu0 %v373
    %v380 = vpop.xlane.xlu0 %379
    %381 = vadd.xlane.f32.xlu0 %v374
    %v382 = vpop.xlane.xlu0 %381
    %v383 = vmul.f32 %v376, 0.015625
    %v384 = vmul.f32 %v378, 0.015625
    %v385 = vmul.f32 %v380, 0.015625
    %v386 = vmul.f32 %v382, 0.015625
    %v387 = vsub.f32 %v367, %v383
    %v388 = vsub.f32 %v368, %v384
    %v389 = vsub.f32 %v369, %v385
    %v390 = vsub.f32 %v370, %v386
    %v391 = vmul.f32 %v387, %v82
    %v392 = vmul.f32 %v388, %v82
    %v393 = vmul.f32 %v389, %v82
    %v394 = vmul.f32 %v390, %v82
    %v395 = vmul.f32 %v391, %v391
    %v396 = vmul.f32 %v392, %v392
    %v397 = vmul.f32 %v393, %v393
    %v398 = vmul.f32 %v394, %v394
    %399 = vadd.xlane.f32.xlu0 %v395
    %v400 = vpop.xlane.xlu0 %399
    %401 = vadd.xlane.f32.xlu0 %v396
    %v402 = vpop.xlane.xlu0 %401
    %403 = vadd.xlane.f32.xlu0 %v397
    %v404 = vpop.xlane.xlu0 %403
    %405 = vadd.xlane.f32.xlu0 %v398
    %v406 = vpop.xlane.xlu0 %405
    %v407 = vmul.f32 %v400, 0.015625
    %v408 = vmul.f32 %v402, 0.015625
    %v409 = vmul.f32 %v404, 0.015625
    %v410 = vmul.f32 %v406, 0.015625
    %v411 = vadd.f32 %v407, 1e-05
    %v412 = vadd.f32 %v408, 1e-05
    %v413 = vadd.f32 %v409, 1e-05
    %v414 = vadd.f32 %v410, 1e-05
    %v415 = vrsqrt.pop %v411
    %v416 = vrsqrt.pop %v412
    %v417 = vrsqrt.pop %v413
    %v418 = vrsqrt.pop %v414
    %v419 = vmul.f32 %v391, %v415
    %v420 = vmul.f32 %v392, %v416
    %v421 = vmul.f32 %v393, %v417
    %v422 = vmul.f32 %v394, %v418
    %423 = vset.pattern.permute.xlu0 38
    %424 = vperm.xlu0 %423, %v74
    %v425 = vpop.permute.xlu0 %424
    %427 = vset.pattern.permute.xlu0 38
    %428 = vperm.xlu0 %427, %v75
    %v429 = vpop.permute.xlu0 %428
    %431 = vset.pattern.permute.xlu0 38
    %432 = vperm.xlu0 %431, %v76
    %v433 = vpop.permute.xlu0 %432
    %435 = vset.pattern.permute.xlu0 38
    %436 = vperm.xlu0 %435, %v77
    %v437 = vpop.permute.xlu0 %436
    %v439 = vmul.f32 %v419, %v425
    %v440 = vmul.f32 %v420, %v429
    %v441 = vmul.f32 %v421, %v433
    %v442 = vmul.f32 %v422, %v437
    %443 = vset.pattern.permute.xlu0 42
    %444 = vperm.xlu0 %443, %v74
    %v445 = vpop.permute.xlu0 %444
    %447 = vset.pattern.permute.xlu0 42
    %448 = vperm.xlu0 %447, %v75
    %v449 = vpop.permute.xlu0 %448
    %451 = vset.pattern.permute.xlu0 42
    %452 = vperm.xlu0 %451, %v76
    %v453 = vpop.permute.xlu0 %452
    %455 = vset.pattern.permute.xlu0 42
    %456 = vperm.xlu0 %455, %v77
    %v457 = vpop.permute.xlu0 %456
    %v459 = vadd.f32 %v439, %v445
    %v460 = vadd.f32 %v440, %v449
    %v461 = vadd.f32 %v441, %v453
    %v462 = vadd.f32 %v442, %v457
    %s463 = scalar_lea.vmem %s4, 16
    %v464 = vld [vmem:[%s463] sm:$0xf]
    %v465 = vld [vmem:[%s463 + $0x4] sm:$0xf]
    %v466 = vld [vmem:[%s463 + $0x8] sm:$0xf]
    %v467 = vld [vmem:[%s463 + $0xc] sm:$0xf]
    %v468 = vpack.c.bf16 %v460, %v459
    %v469 = vpack.c.bf16 %v462, %v461
    %v474 = vunpack.c.l.b16 %v464
    %v475 = vunpack.c.l.b16 %v465
    %v476 = vunpack.c.l.b16 %v466
    %v477 = vunpack.c.l.b16 %v467
    %v478 = vpack.c.b16 %v475, %v474
    %v479 = vpack.c.b16 %v477, %v476
    %v481 = vsel %vm196, %v478, 0
    %v484 = vsel %vm196, %v479, 0
    %486 = vmatprep.subr.bf16.mxu0 0
    %487 = vmatpush1.bf16.msra.mxu0 %v468
    %488 = vmatprep.subr.bf16.mxu0 0
    %489 = vmatpush1.bf16.msra.mxu0 %v469
    %490 = vmatprep.subr.bf16.mxu0 0
    %491 = vmatpush1.bf16.msra.mxu0 0
    %492 = vmatprep.subr.bf16.mxu0 0
    %493 = vmatpush1.bf16.msra.mxu0 0
    %494 = vmatprep.subr.bf16.mxu0 0
    %495 = vmatpush1.bf16.msra.mxu0 0
    %496 = vmatprep.subr.bf16.mxu0 0
    %497 = vmatpush1.bf16.msra.mxu0 0
    %498 = vmatprep.subr.bf16.mxu0 0
    %499 = vmatpush1.bf16.msra.mxu0 0
    %500 = vmatprep.subr.bf16.mxu0 0
    %501 = vmatpush1.bf16.msra.mxu0 0
    %502 = vmatprep.subr.bf16.mxu0 0
    %503 = vmatpush1.bf16.msra.mxu0 0
    %504 = vmatprep.subr.bf16.mxu0 0
    %505 = vmatpush1.bf16.msra.mxu0 0
    %506 = vmatprep.subr.bf16.mxu0 0
    %507 = vmatpush1.bf16.msra.mxu0 0
    %508 = vmatprep.subr.bf16.mxu0 0
    %509 = vmatpush1.bf16.msra.mxu0 0
    %510 = vmatprep.subr.bf16.mxu0 0
    %511 = vmatpush1.bf16.msra.mxu0 0
    %512 = vmatprep.subr.bf16.mxu0 0
    %513 = vmatpush1.bf16.msra.mxu0 0
    %514 = vmatprep.subr.bf16.mxu0 0
    %515 = vmatpush1.bf16.msra.mxu0 0
    %516 = vmatprep.subr.bf16.mxu0 0
    %517 = vmatpush1.bf16.msra.mxu0 0
    %518 = vmatprep.mubr.bf16.mxu0 0
    %519 = vmatmul.mubr.bf16.gmra.mrb[0].mxu0 %v481
    %v520 = vpop.f32.mrb[0].mxu0
    %v521 = vadd.f32 0.0, %v520
    %v522 = vpop.f32.mrb[0].mxu0
    %v523 = vpop.f32.mrb[0].mxu0
    %v524 = vadd.f32 0.0, %v523
    %v525 = vpop.f32.mrb[0].mxu0
    %526 = vmatprep.mubr.bf16.mxu0 0
    %527 = vmatmul.mubr.bf16.gmra.mrb[0].mxu0 %v484
    %v528 = vpop.f32.mrb[0].mxu0
    %v529 = vadd.f32 0.0, %v528
    %v530 = vpop.f32.mrb[0].mxu0
    %v531 = vpop.f32.mrb[0].mxu0
    %v532 = vadd.f32 0.0, %v531
    %v533 = vpop.f32.mrb[0].mxu0
    %534 = vdwg.mxu0
    %v535 = vpack.c.bf16 %v524, %v521
    %v536 = vpack.c.bf16 %v532, %v529
    %537 = vset.pattern.permute.xlu0 35
    %538 = vperm.xlu0 %537, %v74
    %v539 = vpop.permute.xlu0 %538
    %541 = vset.pattern.permute.xlu0 35
    %542 = vperm.xlu0 %541, %v75
    %v543 = vpop.permute.xlu0 %542
    %545 = vset.pattern.permute.xlu0 35
    %546 = vperm.xlu0 %545, %v76
    %v547 = vpop.permute.xlu0 %546
    %549 = vset.pattern.permute.xlu0 35
    %550 = vperm.xlu0 %549, %v77
    %v551 = vpop.permute.xlu0 %550
    %553 = vmatprep.subr.bf16.mxu0 0
    %554 = vmatpush1.bf16.msra.mxu0 %v302
    %555 = vmatprep.subr.bf16.mxu0 0
    %556 = vmatpush1.bf16.msra.mxu0 %v303
    %557 = vmatprep.subr.bf16.mxu0 0
    %558 = vmatpush1.bf16.msra.mxu0 %v304
    %559 = vmatprep.subr.bf16.mxu0 0
    %560 = vmatpush1.bf16.msra.mxu0 %v305
    %561 = vmatprep.subr.bf16.mxu0 0
    %562 = vmatpush1.bf16.msra.mxu0 %v306
    %563 = vmatprep.subr.bf16.mxu0 0
    %564 = vmatpush1.bf16.msra.mxu0 %v307
    %565 = vmatprep.subr.bf16.mxu0 0
    %566 = vmatpush1.bf16.msra.mxu0 %v308
    %567 = vmatprep.subr.bf16.mxu0 0
    %568 = vmatpush1.bf16.msra.mxu0 %v309
    %569 = vmatprep.subr.bf16.mxu0 0
    %570 = vmatpush1.bf16.msra.mxu0 0
    %571 = vmatprep.subr.bf16.mxu0 0
    %572 = vmatpush1.bf16.msra.mxu0 0
    %573 = vmatprep.subr.bf16.mxu0 0
    %574 = vmatpush1.bf16.msra.mxu0 0
    %575 = vmatprep.subr.bf16.mxu0 0
    %576 = vmatpush1.bf16.msra.mxu0 0
    %577 = vmatprep.subr.bf16.mxu0 0
    %578 = vmatpush1.bf16.msra.mxu0 0
    %579 = vmatprep.subr.bf16.mxu0 0
    %580 = vmatpush1.bf16.msra.mxu0 0
    %581 = vmatprep.subr.bf16.mxu0 0
    %582 = vmatpush1.bf16.msra.mxu0 0
    %583 = vmatprep.subr.bf16.mxu0 0
    %584 = vmatpush1.bf16.msra.mxu0 0
    %585 = vmatprep.mubr.bf16.mxu0 0
    %586 = vmatmul.mubr.bf16.gmra.mrb[0].mxu0 %v535
    %v587 = vpop.f32.mrb[0].mxu0
    %v588 = vadd.f32 %v539, %v587
    %v589 = vpop.f32.mrb[0].mxu0
    %v590 = vpop.f32.mrb[0].mxu0
    %v591 = vadd.f32 %v543, %v590
    %v592 = vpop.f32.mrb[0].mxu0
    %593 = vmatprep.mubr.bf16.mxu0 0
    %594 = vmatmul.mubr.bf16.gmra.mrb[0].mxu0 %v536
    %v595 = vpop.f32.mrb[0].mxu0
    %v596 = vadd.f32 %v547, %v595
    %v597 = vpop.f32.mrb[0].mxu0
    %v598 = vpop.f32.mrb[0].mxu0
    %v599 = vadd.f32 %v551, %v598
    %v600 = vpop.f32.mrb[0].mxu0
    %601 = vdwg.mxu0
    %v602 = vmax.f32 %v588, 0.0
    %v603 = vmax.f32 %v591, 0.0
    %v604 = vmax.f32 %v596, 0.0
    %v605 = vmax.f32 %v599, 0.0
    %v606 = vmul.f32 %v602, %v82
    %v607 = vmul.f32 %v603, %v82
    %v608 = vmul.f32 %v604, %v82
    %v609 = vmul.f32 %v605, %v82
    %610 = vadd.xlane.f32.xlu0 %v606
    %v611 = vpop.xlane.xlu0 %610
    %612 = vadd.xlane.f32.xlu0 %v607
    %v613 = vpop.xlane.xlu0 %612
    %614 = vadd.xlane.f32.xlu0 %v608
    %v615 = vpop.xlane.xlu0 %614
    %616 = vadd.xlane.f32.xlu0 %v609
    %v617 = vpop.xlane.xlu0 %616
    %v618 = vmul.f32 %v611, 0.015625
    %v619 = vmul.f32 %v613, 0.015625
    %v620 = vmul.f32 %v615, 0.015625
    %v621 = vmul.f32 %v617, 0.015625
    %v622 = vsub.f32 %v602, %v618
    %v623 = vsub.f32 %v603, %v619
    %v624 = vsub.f32 %v604, %v620
    %v625 = vsub.f32 %v605, %v621
    %v626 = vmul.f32 %v622, %v82
    %v627 = vmul.f32 %v623, %v82
    %v628 = vmul.f32 %v624, %v82
    %v629 = vmul.f32 %v625, %v82
    %v630 = vmul.f32 %v626, %v626
    %v631 = vmul.f32 %v627, %v627
    %v632 = vmul.f32 %v628, %v628
    %v633 = vmul.f32 %v629, %v629
    %634 = vadd.xlane.f32.xlu0 %v630
    %v635 = vpop.xlane.xlu0 %634
    %636 = vadd.xlane.f32.xlu0 %v631
    %v637 = vpop.xlane.xlu0 %636
    %638 = vadd.xlane.f32.xlu0 %v632
    %v639 = vpop.xlane.xlu0 %638
    %640 = vadd.xlane.f32.xlu0 %v633
    %v641 = vpop.xlane.xlu0 %640
    %v642 = vmul.f32 %v635, 0.015625
    %v643 = vmul.f32 %v637, 0.015625
    %v644 = vmul.f32 %v639, 0.015625
    %v645 = vmul.f32 %v641, 0.015625
    %v646 = vadd.f32 %v642, 1e-05
    %v647 = vadd.f32 %v643, 1e-05
    %v648 = vadd.f32 %v644, 1e-05
    %v649 = vadd.f32 %v645, 1e-05
    %v650 = vrsqrt.pop %v646
    %v651 = vrsqrt.pop %v647
    %v652 = vrsqrt.pop %v648
    %v653 = vrsqrt.pop %v649
    %v654 = vmul.f32 %v626, %v650
    %v655 = vmul.f32 %v627, %v651
    %v656 = vmul.f32 %v628, %v652
    %v657 = vmul.f32 %v629, %v653
    %658 = vset.pattern.permute.xlu0 39
    %659 = vperm.xlu0 %658, %v74
    %v660 = vpop.permute.xlu0 %659
    %662 = vset.pattern.permute.xlu0 39
    %663 = vperm.xlu0 %662, %v75
    %v664 = vpop.permute.xlu0 %663
    %666 = vset.pattern.permute.xlu0 39
    %667 = vperm.xlu0 %666, %v76
    %v668 = vpop.permute.xlu0 %667
    %670 = vset.pattern.permute.xlu0 39
    %671 = vperm.xlu0 %670, %v77
    %v672 = vpop.permute.xlu0 %671
    %v674 = vmul.f32 %v654, %v660
    %v675 = vmul.f32 %v655, %v664
    %v676 = vmul.f32 %v656, %v668
    %v677 = vmul.f32 %v657, %v672
    %678 = vset.pattern.permute.xlu0 43
    %679 = vperm.xlu0 %678, %v74
    %v680 = vpop.permute.xlu0 %679
    %682 = vset.pattern.permute.xlu0 43
    %683 = vperm.xlu0 %682, %v75
    %v684 = vpop.permute.xlu0 %683
    %686 = vset.pattern.permute.xlu0 43
    %687 = vperm.xlu0 %686, %v76
    %v688 = vpop.permute.xlu0 %687
    %690 = vset.pattern.permute.xlu0 43
    %691 = vperm.xlu0 %690, %v77
    %v692 = vpop.permute.xlu0 %691
    %v694 = vadd.f32 %v674, %v680
    %v695 = vadd.f32 %v675, %v684
    %v696 = vadd.f32 %v676, %v688
    %v697 = vadd.f32 %v677, %v692
    %s698 = scalar_lea.vmem %s4, 32
    %v699 = vld [vmem:[%s698] sm:$0xf]
    %v700 = vld [vmem:[%s698 + $0x4] sm:$0xf]
    %v701 = vld [vmem:[%s698 + $0x8] sm:$0xf]
    %v702 = vld [vmem:[%s698 + $0xc] sm:$0xf]
    %v703 = vpack.c.bf16 %v695, %v694
    %v704 = vpack.c.bf16 %v697, %v696
    %v709 = vunpack.c.l.b16 %v699
    %v710 = vunpack.c.l.b16 %v700
    %v711 = vunpack.c.l.b16 %v701
    %v712 = vunpack.c.l.b16 %v702
    %v713 = vpack.c.b16 %v710, %v709
    %v714 = vpack.c.b16 %v712, %v711
    %v716 = vsel %vm196, %v713, 0
    %v719 = vsel %vm196, %v714, 0
    %721 = vmatprep.subr.bf16.mxu0 0
    %722 = vmatpush1.bf16.msra.mxu0 %v703
    %723 = vmatprep.subr.bf16.mxu0 0
    %724 = vmatpush1.bf16.msra.mxu0 %v704
    %725 = vmatprep.subr.bf16.mxu0 0
    %726 = vmatpush1.bf16.msra.mxu0 0
    %727 = vmatprep.subr.bf16.mxu0 0
    %728 = vmatpush1.bf16.msra.mxu0 0
    %729 = vmatprep.subr.bf16.mxu0 0
    %730 = vmatpush1.bf16.msra.mxu0 0
    %731 = vmatprep.subr.bf16.mxu0 0
    %732 = vmatpush1.bf16.msra.mxu0 0
    %733 = vmatprep.subr.bf16.mxu0 0
    %734 = vmatpush1.bf16.msra.mxu0 0
    %735 = vmatprep.subr.bf16.mxu0 0
    %736 = vmatpush1.bf16.msra.mxu0 0
    %737 = vmatprep.subr.bf16.mxu0 0
    %738 = vmatpush1.bf16.msra.mxu0 0
    %739 = vmatprep.subr.bf16.mxu0 0
    %740 = vmatpush1.bf16.msra.mxu0 0
    %741 = vmatprep.subr.bf16.mxu0 0
    %742 = vmatpush1.bf16.msra.mxu0 0
    %743 = vmatprep.subr.bf16.mxu0 0
    %744 = vmatpush1.bf16.msra.mxu0 0
    %745 = vmatprep.subr.bf16.mxu0 0
    %746 = vmatpush1.bf16.msra.mxu0 0
    %747 = vmatprep.subr.bf16.mxu0 0
    %748 = vmatpush1.bf16.msra.mxu0 0
    %749 = vmatprep.subr.bf16.mxu0 0
    %750 = vmatpush1.bf16.msra.mxu0 0
    %751 = vmatprep.subr.bf16.mxu0 0
    %752 = vmatpush1.bf16.msra.mxu0 0
    %753 = vmatprep.mubr.bf16.mxu0 0
    %754 = vmatmul.mubr.bf16.gmra.mrb[0].mxu0 %v716
    %v755 = vpop.f32.mrb[0].mxu0
    %v756 = vadd.f32 0.0, %v755
    %v757 = vpop.f32.mrb[0].mxu0
    %v758 = vpop.f32.mrb[0].mxu0
    %v759 = vadd.f32 0.0, %v758
    %v760 = vpop.f32.mrb[0].mxu0
    %761 = vmatprep.mubr.bf16.mxu0 0
    %762 = vmatmul.mubr.bf16.gmra.mrb[0].mxu0 %v719
    %v763 = vpop.f32.mrb[0].mxu0
    %v764 = vadd.f32 0.0, %v763
    %v765 = vpop.f32.mrb[0].mxu0
    %v766 = vpop.f32.mrb[0].mxu0
    %v767 = vadd.f32 0.0, %v766
    %v768 = vpop.f32.mrb[0].mxu0
    %769 = vdwg.mxu0
    %v770 = vpack.c.bf16 %v759, %v756
    %v771 = vpack.c.bf16 %v767, %v764
    %772 = vset.pattern.permute.xlu0 36
    %773 = vperm.xlu0 %772, %v74
    %v774 = vpop.permute.xlu0 %773
    %776 = vset.pattern.permute.xlu0 36
    %777 = vperm.xlu0 %776, %v75
    %v778 = vpop.permute.xlu0 %777
    %780 = vset.pattern.permute.xlu0 36
    %781 = vperm.xlu0 %780, %v76
    %v782 = vpop.permute.xlu0 %781
    %784 = vset.pattern.permute.xlu0 36
    %785 = vperm.xlu0 %784, %v77
    %v786 = vpop.permute.xlu0 %785
    %788 = vmatprep.subr.bf16.mxu0 0
    %789 = vmatpush1.bf16.msra.mxu0 %v302
    %790 = vmatprep.subr.bf16.mxu0 0
    %791 = vmatpush1.bf16.msra.mxu0 %v303
    %792 = vmatprep.subr.bf16.mxu0 0
    %793 = vmatpush1.bf16.msra.mxu0 %v304
    %794 = vmatprep.subr.bf16.mxu0 0
    %795 = vmatpush1.bf16.msra.mxu0 %v305
    %796 = vmatprep.subr.bf16.mxu0 0
    %797 = vmatpush1.bf16.msra.mxu0 %v306
    %798 = vmatprep.subr.bf16.mxu0 0
    %799 = vmatpush1.bf16.msra.mxu0 %v307
    %800 = vmatprep.subr.bf16.mxu0 0
    %801 = vmatpush1.bf16.msra.mxu0 %v308
    %802 = vmatprep.subr.bf16.mxu0 0
    %803 = vmatpush1.bf16.msra.mxu0 %v309
    %804 = vmatprep.subr.bf16.mxu0 0
    %805 = vmatpush1.bf16.msra.mxu0 0
    %806 = vmatprep.subr.bf16.mxu0 0
    %807 = vmatpush1.bf16.msra.mxu0 0
    %808 = vmatprep.subr.bf16.mxu0 0
    %809 = vmatpush1.bf16.msra.mxu0 0
    %810 = vmatprep.subr.bf16.mxu0 0
    %811 = vmatpush1.bf16.msra.mxu0 0
    %812 = vmatprep.subr.bf16.mxu0 0
    %813 = vmatpush1.bf16.msra.mxu0 0
    %814 = vmatprep.subr.bf16.mxu0 0
    %815 = vmatpush1.bf16.msra.mxu0 0
    %816 = vmatprep.subr.bf16.mxu0 0
    %817 = vmatpush1.bf16.msra.mxu0 0
    %818 = vmatprep.subr.bf16.mxu0 0
    %819 = vmatpush1.bf16.msra.mxu0 0
    %820 = vmatprep.mubr.bf16.mxu0 0
    %821 = vmatmul.mubr.bf16.gmra.mrb[0].mxu0 %v770
    %v822 = vpop.f32.mrb[0].mxu0
    %v823 = vadd.f32 %v774, %v822
    %v824 = vpop.f32.mrb[0].mxu0
    %v825 = vpop.f32.mrb[0].mxu0
    %v826 = vadd.f32 %v778, %v825
    %v827 = vpop.f32.mrb[0].mxu0
    %828 = vmatprep.mubr.bf16.mxu0 0
    %829 = vmatmul.mubr.bf16.gmra.mrb[0].mxu0 %v771
    %v830 = vpop.f32.mrb[0].mxu0
    %v831 = vadd.f32 %v782, %v830
    %v832 = vpop.f32.mrb[0].mxu0
    %v833 = vpop.f32.mrb[0].mxu0
    %v834 = vadd.f32 %v786, %v833
    %v835 = vpop.f32.mrb[0].mxu0
    %836 = vdwg.mxu0
    %v837 = vmax.f32 %v823, 0.0
    %v838 = vmax.f32 %v826, 0.0
    %v839 = vmax.f32 %v831, 0.0
    %v840 = vmax.f32 %v834, 0.0
    %v841 = vmul.f32 %v837, %v82
    %v842 = vmul.f32 %v838, %v82
    %v843 = vmul.f32 %v839, %v82
    %v844 = vmul.f32 %v840, %v82
    %845 = vadd.xlane.f32.xlu0 %v841
    %v846 = vpop.xlane.xlu0 %845
    %847 = vadd.xlane.f32.xlu0 %v842
    %v848 = vpop.xlane.xlu0 %847
    %849 = vadd.xlane.f32.xlu0 %v843
    %v850 = vpop.xlane.xlu0 %849
    %851 = vadd.xlane.f32.xlu0 %v844
    %v852 = vpop.xlane.xlu0 %851
    %v853 = vmul.f32 %v846, 0.015625
    %v854 = vmul.f32 %v848, 0.015625
    %v855 = vmul.f32 %v850, 0.015625
    %v856 = vmul.f32 %v852, 0.015625
    %v857 = vsub.f32 %v837, %v853
    %v858 = vsub.f32 %v838, %v854
    %v859 = vsub.f32 %v839, %v855
    %v860 = vsub.f32 %v840, %v856
    %v861 = vmul.f32 %v857, %v82
    %v862 = vmul.f32 %v858, %v82
    %v863 = vmul.f32 %v859, %v82
    %v864 = vmul.f32 %v860, %v82
    %v865 = vmul.f32 %v861, %v861
    %v866 = vmul.f32 %v862, %v862
    %v867 = vmul.f32 %v863, %v863
    %v868 = vmul.f32 %v864, %v864
    %869 = vadd.xlane.f32.xlu0 %v865
    %v870 = vpop.xlane.xlu0 %869
    %871 = vadd.xlane.f32.xlu0 %v866
    %v872 = vpop.xlane.xlu0 %871
    %873 = vadd.xlane.f32.xlu0 %v867
    %v874 = vpop.xlane.xlu0 %873
    %875 = vadd.xlane.f32.xlu0 %v868
    %v876 = vpop.xlane.xlu0 %875
    %v877 = vmul.f32 %v870, 0.015625
    %v878 = vmul.f32 %v872, 0.015625
    %v879 = vmul.f32 %v874, 0.015625
    %v880 = vmul.f32 %v876, 0.015625
    %v881 = vadd.f32 %v877, 1e-05
    %v882 = vadd.f32 %v878, 1e-05
    %v883 = vadd.f32 %v879, 1e-05
    %v884 = vadd.f32 %v880, 1e-05
    %v885 = vrsqrt.pop %v881
    %v886 = vrsqrt.pop %v882
    %v887 = vrsqrt.pop %v883
    %v888 = vrsqrt.pop %v884
    %v889 = vmul.f32 %v861, %v885
    %v890 = vmul.f32 %v862, %v886
    %v891 = vmul.f32 %v863, %v887
    %v892 = vmul.f32 %v864, %v888
    %893 = vset.pattern.permute.xlu0 40
    %894 = vperm.xlu0 %893, %v74
    %v895 = vpop.permute.xlu0 %894
    %897 = vset.pattern.permute.xlu0 40
    %898 = vperm.xlu0 %897, %v75
    %v899 = vpop.permute.xlu0 %898
    %901 = vset.pattern.permute.xlu0 40
    %902 = vperm.xlu0 %901, %v76
    %v903 = vpop.permute.xlu0 %902
    %905 = vset.pattern.permute.xlu0 40
    %906 = vperm.xlu0 %905, %v77
    %v907 = vpop.permute.xlu0 %906
    %v909 = vmul.f32 %v889, %v895
    %v910 = vmul.f32 %v890, %v899
    %v911 = vmul.f32 %v891, %v903
    %v912 = vmul.f32 %v892, %v907
    %913 = vset.pattern.permute.xlu0 44
    %914 = vperm.xlu0 %913, %v74
    %v915 = vpop.permute.xlu0 %914
    %917 = vset.pattern.permute.xlu0 44
    %918 = vperm.xlu0 %917, %v75
    %v919 = vpop.permute.xlu0 %918
    %921 = vset.pattern.permute.xlu0 44
    %922 = vperm.xlu0 %921, %v76
    %v923 = vpop.permute.xlu0 %922
    %925 = vset.pattern.permute.xlu0 44
    %926 = vperm.xlu0 %925, %v77
    %v927 = vpop.permute.xlu0 %926
    %v929 = vadd.f32 %v909, %v915
    %v930 = vadd.f32 %v910, %v919
    %v931 = vadd.f32 %v911, %v923
    %v932 = vadd.f32 %v912, %v927
    %s933 = scalar_lea.vmem %s4, 48
    %v934 = vld [vmem:[%s933] sm:$0xf]
    %v935 = vld [vmem:[%s933 + $0x4] sm:$0xf]
    %v936 = vld [vmem:[%s933 + $0x8] sm:$0xf]
    %v937 = vld [vmem:[%s933 + $0xc] sm:$0xf]
    %v938 = vpack.c.bf16 %v930, %v929
    %v939 = vpack.c.bf16 %v932, %v931
    %v944 = vunpack.c.l.b16 %v934
    %v945 = vunpack.c.l.b16 %v935
    %v946 = vunpack.c.l.b16 %v936
    %v947 = vunpack.c.l.b16 %v937
    %v948 = vpack.c.b16 %v945, %v944
    %v949 = vpack.c.b16 %v947, %v946
    %v951 = vsel %vm196, %v948, 0
    %v954 = vsel %vm196, %v949, 0
    %956 = vmatprep.subr.bf16.mxu0 0
    %957 = vmatpush1.bf16.msra.mxu0 %v938
    %958 = vmatprep.subr.bf16.mxu0 0
    %959 = vmatpush1.bf16.msra.mxu0 %v939
    %960 = vmatprep.subr.bf16.mxu0 0
    %961 = vmatpush1.bf16.msra.mxu0 0
    %962 = vmatprep.subr.bf16.mxu0 0
    %963 = vmatpush1.bf16.msra.mxu0 0
    %964 = vmatprep.subr.bf16.mxu0 0
    %965 = vmatpush1.bf16.msra.mxu0 0
    %966 = vmatprep.subr.bf16.mxu0 0
    %967 = vmatpush1.bf16.msra.mxu0 0
    %968 = vmatprep.subr.bf16.mxu0 0
    %969 = vmatpush1.bf16.msra.mxu0 0
    %970 = vmatprep.subr.bf16.mxu0 0
    %971 = vmatpush1.bf16.msra.mxu0 0
    %972 = vmatprep.subr.bf16.mxu0 0
    %973 = vmatpush1.bf16.msra.mxu0 0
    %974 = vmatprep.subr.bf16.mxu0 0
    %975 = vmatpush1.bf16.msra.mxu0 0
    %976 = vmatprep.subr.bf16.mxu0 0
    %977 = vmatpush1.bf16.msra.mxu0 0
    %978 = vmatprep.subr.bf16.mxu0 0
    %979 = vmatpush1.bf16.msra.mxu0 0
    %980 = vmatprep.subr.bf16.mxu0 0
    %981 = vmatpush1.bf16.msra.mxu0 0
    %982 = vmatprep.subr.bf16.mxu0 0
    %983 = vmatpush1.bf16.msra.mxu0 0
    %984 = vmatprep.subr.bf16.mxu0 0
    %985 = vmatpush1.bf16.msra.mxu0 0
    %986 = vmatprep.subr.bf16.mxu0 0
    %987 = vmatpush1.bf16.msra.mxu0 0
    %988 = vmatprep.mubr.bf16.mxu0 0
    %989 = vmatmul.mubr.bf16.gmra.mrb[0].mxu0 %v951
    %v990 = vpop.f32.mrb[0].mxu0
    %v991 = vadd.f32 0.0, %v990
    %v992 = vpop.f32.mrb[0].mxu0
    %v993 = vpop.f32.mrb[0].mxu0
    %v994 = vadd.f32 0.0, %v993
    %v995 = vpop.f32.mrb[0].mxu0
    %996 = vmatprep.mubr.bf16.mxu0 0
    %997 = vmatmul.mubr.bf16.gmra.mrb[0].mxu0 %v954
    %v998 = vpop.f32.mrb[0].mxu0
    %v999 = vadd.f32 0.0, %v998
    %v1000 = vpop.f32.mrb[0].mxu0
    %v1001 = vpop.f32.mrb[0].mxu0
    %v1002 = vadd.f32 0.0, %v1001
    %v1003 = vpop.f32.mrb[0].mxu0
    %1004 = vdwg.mxu0
    %v1005 = vpack.c.bf16 %v994, %v991
    %v1006 = vpack.c.bf16 %v1002, %v999
    %1007 = vset.pattern.permute.xlu0 37
    %1008 = vperm.xlu0 %1007, %v74
    %v1009 = vpop.permute.xlu0 %1008
    %1011 = vset.pattern.permute.xlu0 37
    %1012 = vperm.xlu0 %1011, %v75
    %v1013 = vpop.permute.xlu0 %1012
    %1015 = vset.pattern.permute.xlu0 37
    %1016 = vperm.xlu0 %1015, %v76
    %v1017 = vpop.permute.xlu0 %1016
    %1019 = vset.pattern.permute.xlu0 37
    %1020 = vperm.xlu0 %1019, %v77
    %v1021 = vpop.permute.xlu0 %1020
    %1023 = vmatprep.subr.bf16.mxu0 0
    %1024 = vmatpush1.bf16.msra.mxu0 %v302
    %1025 = vmatprep.subr.bf16.mxu0 0
    %1026 = vmatpush1.bf16.msra.mxu0 %v303
    %1027 = vmatprep.subr.bf16.mxu0 0
    %1028 = vmatpush1.bf16.msra.mxu0 %v304
    %1029 = vmatprep.subr.bf16.mxu0 0
    %1030 = vmatpush1.bf16.msra.mxu0 %v305
    %1031 = vmatprep.subr.bf16.mxu0 0
    %1032 = vmatpush1.bf16.msra.mxu0 %v306
    %1033 = vmatprep.subr.bf16.mxu0 0
    %1034 = vmatpush1.bf16.msra.mxu0 %v307
    %1035 = vmatprep.subr.bf16.mxu0 0
    %1036 = vmatpush1.bf16.msra.mxu0 %v308
    %1037 = vmatprep.subr.bf16.mxu0 0
    %1038 = vmatpush1.bf16.msra.mxu0 %v309
    %1039 = vmatprep.subr.bf16.mxu0 0
    %1040 = vmatpush1.bf16.msra.mxu0 0
    %1041 = vmatprep.subr.bf16.mxu0 0
    %1042 = vmatpush1.bf16.msra.mxu0 0
    %1043 = vmatprep.subr.bf16.mxu0 0
    %1044 = vmatpush1.bf16.msra.mxu0 0
    %1045 = vmatprep.subr.bf16.mxu0 0
    %1046 = vmatpush1.bf16.msra.mxu0 0
    %1047 = vmatprep.subr.bf16.mxu0 0
    %1048 = vmatpush1.bf16.msra.mxu0 0
    %1049 = vmatprep.subr.bf16.mxu0 0
    %1050 = vmatpush1.bf16.msra.mxu0 0
    %1051 = vmatprep.subr.bf16.mxu0 0
    %1052 = vmatpush1.bf16.msra.mxu0 0
    %1053 = vmatprep.subr.bf16.mxu0 0
    %1054 = vmatpush1.bf16.msra.mxu0 0
    %1055 = vmatprep.mubr.bf16.mxu0 0
    %1056 = vmatmul.mubr.bf16.gmra.mrb[0].mxu0 %v1005
    %v1057 = vpop.f32.mrb[0].mxu0
    %v1058 = vadd.f32 %v1009, %v1057
    %v1059 = vpop.f32.mrb[0].mxu0
    %v1060 = vpop.f32.mrb[0].mxu0
    %v1061 = vadd.f32 %v1013, %v1060
    %v1062 = vpop.f32.mrb[0].mxu0
    %1063 = vmatprep.mubr.bf16.mxu0 0
    %1064 = vmatmul.mubr.bf16.gmra.mrb[0].mxu0 %v1006
    %v1065 = vpop.f32.mrb[0].mxu0
    %v1066 = vadd.f32 %v1017, %v1065
    %v1067 = vpop.f32.mrb[0].mxu0
    %v1068 = vpop.f32.mrb[0].mxu0
    %v1069 = vadd.f32 %v1021, %v1068
    %v1070 = vpop.f32.mrb[0].mxu0
    %1071 = vdwg.mxu0
    %v1072 = vmax.f32 %v1058, 0.0
    %v1073 = vmax.f32 %v1061, 0.0
    %v1074 = vmax.f32 %v1066, 0.0
    %v1075 = vmax.f32 %v1069, 0.0
    %v1076 = vmul.f32 %v1072, %v82
    %v1077 = vmul.f32 %v1073, %v82
    %v1078 = vmul.f32 %v1074, %v82
    %v1079 = vmul.f32 %v1075, %v82
    %1080 = vadd.xlane.f32.xlu0 %v1076
    %v1081 = vpop.xlane.xlu0 %1080
    %1082 = vadd.xlane.f32.xlu0 %v1077
    %v1083 = vpop.xlane.xlu0 %1082
    %1084 = vadd.xlane.f32.xlu0 %v1078
    %v1085 = vpop.xlane.xlu0 %1084
    %1086 = vadd.xlane.f32.xlu0 %v1079
    %v1087 = vpop.xlane.xlu0 %1086
    %v1088 = vmul.f32 %v1081, 0.015625
    %v1089 = vmul.f32 %v1083, 0.015625
    %v1090 = vmul.f32 %v1085, 0.015625
    %v1091 = vmul.f32 %v1087, 0.015625
    %v1092 = vsub.f32 %v1072, %v1088
    %v1093 = vsub.f32 %v1073, %v1089
    %v1094 = vsub.f32 %v1074, %v1090
    %v1095 = vsub.f32 %v1075, %v1091
    %v1096 = vmul.f32 %v1092, %v82
    %v1097 = vmul.f32 %v1093, %v82
    %v1098 = vmul.f32 %v1094, %v82
    %v1099 = vmul.f32 %v1095, %v82
    %v1100 = vmul.f32 %v1096, %v1096
    %v1101 = vmul.f32 %v1097, %v1097
    %v1102 = vmul.f32 %v1098, %v1098
    %v1103 = vmul.f32 %v1099, %v1099
    %1104 = vadd.xlane.f32.xlu0 %v1100
    %v1105 = vpop.xlane.xlu0 %1104
    %1106 = vadd.xlane.f32.xlu0 %v1101
    %v1107 = vpop.xlane.xlu0 %1106
    %1108 = vadd.xlane.f32.xlu0 %v1102
    %v1109 = vpop.xlane.xlu0 %1108
    %1110 = vadd.xlane.f32.xlu0 %v1103
    %v1111 = vpop.xlane.xlu0 %1110
    %v1112 = vmul.f32 %v1105, 0.015625
    %v1113 = vmul.f32 %v1107, 0.015625
    %v1114 = vmul.f32 %v1109, 0.015625
    %v1115 = vmul.f32 %v1111, 0.015625
    %v1116 = vadd.f32 %v1112, 1e-05
    %v1117 = vadd.f32 %v1113, 1e-05
    %v1118 = vadd.f32 %v1114, 1e-05
    %v1119 = vadd.f32 %v1115, 1e-05
    %v1120 = vrsqrt.pop %v1116
    %v1121 = vrsqrt.pop %v1117
    %v1122 = vrsqrt.pop %v1118
    %v1123 = vrsqrt.pop %v1119
    %v1124 = vmul.f32 %v1096, %v1120
    %v1125 = vmul.f32 %v1097, %v1121
    %v1126 = vmul.f32 %v1098, %v1122
    %v1127 = vmul.f32 %v1099, %v1123
    %1128 = vset.pattern.permute.xlu0 41
    %1129 = vperm.xlu0 %1128, %v74
    %v1130 = vpop.permute.xlu0 %1129
    %1132 = vset.pattern.permute.xlu0 41
    %1133 = vperm.xlu0 %1132, %v75
    %v1134 = vpop.permute.xlu0 %1133
    %1136 = vset.pattern.permute.xlu0 41
    %1137 = vperm.xlu0 %1136, %v76
    %v1138 = vpop.permute.xlu0 %1137
    %1140 = vset.pattern.permute.xlu0 41
    %1141 = vperm.xlu0 %1140, %v77
    %v1142 = vpop.permute.xlu0 %1141
    %v1144 = vmul.f32 %v1124, %v1130
    %v1145 = vmul.f32 %v1125, %v1134
    %v1146 = vmul.f32 %v1126, %v1138
    %v1147 = vmul.f32 %v1127, %v1142
    %1148 = vset.pattern.permute.xlu0 45
    %1149 = vperm.xlu0 %1148, %v74
    %v1150 = vpop.permute.xlu0 %1149
    %1152 = vset.pattern.permute.xlu0 45
    %1153 = vperm.xlu0 %1152, %v75
    %v1154 = vpop.permute.xlu0 %1153
    %1156 = vset.pattern.permute.xlu0 45
    %1157 = vperm.xlu0 %1156, %v76
    %v1158 = vpop.permute.xlu0 %1157
    %1160 = vset.pattern.permute.xlu0 45
    %1161 = vperm.xlu0 %1160, %v77
    %v1162 = vpop.permute.xlu0 %1161
    %v1164 = vadd.f32 %v1144, %v1150
    %v1165 = vadd.f32 %v1145, %v1154
    %v1166 = vadd.f32 %v1146, %v1158
    %v1167 = vadd.f32 %v1147, %v1162
    %v1168 = vld [vmem:[%s2] sm:$0xff]
    %v1169 = vld [vmem:[%s2 + $0x8] sm:$0xff]
    %v1170 = vld [vmem:[%s2 + $0x10] sm:$0xff]
    %v1171 = vld [vmem:[%s2 + $0x18] sm:$0xff]
    %v1172 = vld [vmem:[%s2 + $0x20] sm:$0xff]
    %v1173 = vld [vmem:[%s2 + $0x28] sm:$0xff]
    %v1174 = vld [vmem:[%s2 + $0x30] sm:$0xff]
    %v1175 = vld [vmem:[%s2 + $0x38] sm:$0xff]
    %v1176 = vld [vmem:[%s2 + $0x40] sm:$0xff]
    %v1177 = vld [vmem:[%s2 + $0x48] sm:$0xff]
    %v1178 = vld [vmem:[%s2 + $0x50] sm:$0xff]
    %v1179 = vld [vmem:[%s2 + $0x58] sm:$0xff]
    %v1180 = vld [vmem:[%s2 + $0x60] sm:$0xff]
    %v1181 = vld [vmem:[%s2 + $0x68] sm:$0xff]
    %v1182 = vld [vmem:[%s2 + $0x70] sm:$0xff]
    %v1183 = vld [vmem:[%s2 + $0x78] sm:$0xff]
    %1184 = vmatprep.subr.mxu0 0.0
    %1185 = vmatpush1.msra.mxu0 %v1168
    %1186 = vmatprep.subr.mxu0 0.0
    %1187 = vmatpush1.msra.mxu0 %v1169
    %1188 = vmatprep.subr.mxu0 0.0
    %1189 = vmatpush1.msra.mxu0 %v1170
    %1190 = vmatprep.subr.mxu0 0.0
    %1191 = vmatpush1.msra.mxu0 %v1171
    %1192 = vmatprep.subr.mxu0 0.0
    %1193 = vmatpush1.msra.mxu0 %v1172
    %1194 = vmatprep.subr.mxu0 0.0
    %1195 = vmatpush1.msra.mxu0 %v1173
    %1196 = vmatprep.subr.mxu0 0.0
    %1197 = vmatpush1.msra.mxu0 %v1174
    %1198 = vmatprep.subr.mxu0 0.0
    %1199 = vmatpush1.msra.mxu0 %v1175
    %1200 = vmatprep.subr.mxu0 0.0
    %1201 = vmatpush1.msra.mxu0 %v1176
    %1202 = vmatprep.subr.mxu0 0.0
    %1203 = vmatpush1.msra.mxu0 %v1177
    %1204 = vmatprep.subr.mxu0 0.0
    %1205 = vmatpush1.msra.mxu0 %v1178
    %1206 = vmatprep.subr.mxu0 0.0
    %1207 = vmatpush1.msra.mxu0 %v1179
    %1208 = vmatprep.subr.mxu0 0.0
    %1209 = vmatpush1.msra.mxu0 %v1180
    %1210 = vmatprep.subr.mxu0 0.0
    %1211 = vmatpush1.msra.mxu0 %v1181
    %1212 = vmatprep.subr.mxu0 0.0
    %1213 = vmatpush1.msra.mxu0 %v1182
    %1214 = vmatprep.subr.mxu0 0.0
    %1215 = vmatpush1.msra.mxu0 %v1183
    %1216 = vmatprep.subr.mxu0 0.0
    %1217 = vmatpush1.msra.mxu0 0.0
    %1218 = vmatprep.subr.mxu0 0.0
    %1219 = vmatpush1.msra.mxu0 0.0
    %1220 = vmatprep.subr.mxu0 0.0
    %1221 = vmatpush1.msra.mxu0 0.0
    %1222 = vmatprep.subr.mxu0 0.0
    %1223 = vmatpush1.msra.mxu0 0.0
    %1224 = vmatprep.subr.mxu0 0.0
    %1225 = vmatpush1.msra.mxu0 0.0
    %1226 = vmatprep.subr.mxu0 0.0
    %1227 = vmatpush1.msra.mxu0 0.0
    %1228 = vmatprep.subr.mxu0 0.0
    %1229 = vmatpush1.msra.mxu0 0.0
    %1230 = vmatprep.subr.mxu0 0.0
    %1231 = vmatpush1.msra.mxu0 0.0
    %1232 = vmatprep.subr.mxu0 0.0
    %1233 = vmatpush1.msra.mxu0 0.0
    %1234 = vmatprep.subr.mxu0 0.0
    %1235 = vmatpush1.msra.mxu0 0.0
    %1236 = vmatprep.subr.mxu0 0.0
    %1237 = vmatpush1.msra.mxu0 0.0
    %1238 = vmatprep.subr.mxu0 0.0
    %1239 = vmatpush1.msra.mxu0 0.0
    %1240 = vmatprep.subr.mxu0 0.0
    %1241 = vmatpush1.msra.mxu0 0.0
    %1242 = vmatprep.subr.mxu0 0.0
    %1243 = vmatpush1.msra.mxu0 0.0
    %1244 = vmatprep.subr.mxu0 0.0
    %1245 = vmatpush1.msra.mxu0 0.0
    %1246 = vmatprep.subr.mxu0 0.0
    %1247 = vmatpush1.msra.mxu0 0.0
    %1248 = vmatprep.mubr.f32.mxu0 0.0
    %1249 = vmatmul.mubr.f32.gmra.mrb[0].mxu0 %v1164
    %v1250 = vpop.f32.mrb[0].mxu0
    %v1251 = vadd.f32 0.0, %v1250
    %v1252 = vpop.f32.mrb[0].mxu0
    %1253 = vmatprep.mubr.f32.mxu0 0.0
    %1254 = vmatmul.mubr.f32.gmra.mrb[0].mxu0 %v1165
    %v1255 = vpop.f32.mrb[0].mxu0
    %v1256 = vadd.f32 0.0, %v1255
    %v1257 = vpop.f32.mrb[0].mxu0
    %1258 = vmatprep.mubr.f32.mxu0 0.0
    %1259 = vmatmul.mubr.f32.gmra.mrb[0].mxu0 %v1166
    %v1260 = vpop.f32.mrb[0].mxu0
    %v1261 = vadd.f32 0.0, %v1260
    %v1262 = vpop.f32.mrb[0].mxu0
    %1263 = vmatprep.mubr.f32.mxu0 0.0
    %1264 = vmatmul.mubr.f32.gmra.mrb[0].mxu0 %v1167
    %v1265 = vpop.f32.mrb[0].mxu0
    %v1266 = vadd.f32 0.0, %v1265
    %v1267 = vpop.f32.mrb[0].mxu0
    %1268 = vdwg.mxu0
    %1269 = vset.pattern.permute.xlu0 46
    %1270 = vperm.xlu0 %1269, %v74
    %v1271 = vpop.permute.xlu0 %1270
    %1273 = vset.pattern.permute.xlu0 46
    %1274 = vperm.xlu0 %1273, %v75
    %v1275 = vpop.permute.xlu0 %1274
    %1277 = vset.pattern.permute.xlu0 46
    %1278 = vperm.xlu0 %1277, %v76
    %v1279 = vpop.permute.xlu0 %1278
    %1281 = vset.pattern.permute.xlu0 46
    %1282 = vperm.xlu0 %1281, %v77
    %v1283 = vpop.permute.xlu0 %1282
    %v1285 = vsel %vm196, %v74, 0
    %v1287 = vsel %vm196, %v75, 0
    %v1289 = vsel %vm196, %v76, 0
    %v1291 = vsel %vm196, %v77, 0
    %1293 = vmatprep.subr.mxu0 0.0
    %1294 = vmatpush1.msra.mxu0 %v1251
    %1295 = vmatprep.subr.mxu0 0.0
    %1296 = vmatpush1.msra.mxu0 %v1256
    %1297 = vmatprep.subr.mxu0 0.0
    %1298 = vmatpush1.msra.mxu0 %v1261
    %1299 = vmatprep.subr.mxu0 0.0
    %1300 = vmatpush1.msra.mxu0 %v1266
    %1301 = vmatprep.subr.mxu0 0.0
    %1302 = vmatpush1.msra.mxu0 0.0
    %1303 = vmatprep.subr.mxu0 0.0
    %1304 = vmatpush1.msra.mxu0 0.0
    %1305 = vmatprep.subr.mxu0 0.0
    %1306 = vmatpush1.msra.mxu0 0.0
    %1307 = vmatprep.subr.mxu0 0.0
    %1308 = vmatpush1.msra.mxu0 0.0
    %1309 = vmatprep.subr.mxu0 0.0
    %1310 = vmatpush1.msra.mxu0 0.0
    %1311 = vmatprep.subr.mxu0 0.0
    %1312 = vmatpush1.msra.mxu0 0.0
    %1313 = vmatprep.subr.mxu0 0.0
    %1314 = vmatpush1.msra.mxu0 0.0
    %1315 = vmatprep.subr.mxu0 0.0
    %1316 = vmatpush1.msra.mxu0 0.0
    %1317 = vmatprep.subr.mxu0 0.0
    %1318 = vmatpush1.msra.mxu0 0.0
    %1319 = vmatprep.subr.mxu0 0.0
    %1320 = vmatpush1.msra.mxu0 0.0
    %1321 = vmatprep.subr.mxu0 0.0
    %1322 = vmatpush1.msra.mxu0 0.0
    %1323 = vmatprep.subr.mxu0 0.0
    %1324 = vmatpush1.msra.mxu0 0.0
    %1325 = vmatprep.subr.mxu0 0.0
    %1326 = vmatpush1.msra.mxu0 0.0
    %1327 = vmatprep.subr.mxu0 0.0
    %1328 = vmatpush1.msra.mxu0 0.0
    %1329 = vmatprep.subr.mxu0 0.0
    %1330 = vmatpush1.msra.mxu0 0.0
    %1331 = vmatprep.subr.mxu0 0.0
    %1332 = vmatpush1.msra.mxu0 0.0
    %1333 = vmatprep.subr.mxu0 0.0
    %1334 = vmatpush1.msra.mxu0 0.0
    %1335 = vmatprep.subr.mxu0 0.0
    %1336 = vmatpush1.msra.mxu0 0.0
    %1337 = vmatprep.subr.mxu0 0.0
    %1338 = vmatpush1.msra.mxu0 0.0
    %1339 = vmatprep.subr.mxu0 0.0
    %1340 = vmatpush1.msra.mxu0 0.0
    %1341 = vmatprep.subr.mxu0 0.0
    %1342 = vmatpush1.msra.mxu0 0.0
    %1343 = vmatprep.subr.mxu0 0.0
    %1344 = vmatpush1.msra.mxu0 0.0
    %1345 = vmatprep.subr.mxu0 0.0
    %1346 = vmatpush1.msra.mxu0 0.0
    %1347 = vmatprep.subr.mxu0 0.0
    %1348 = vmatpush1.msra.mxu0 0.0
    %1349 = vmatprep.subr.mxu0 0.0
    %1350 = vmatpush1.msra.mxu0 0.0
    %1351 = vmatprep.subr.mxu0 0.0
    %1352 = vmatpush1.msra.mxu0 0.0
    %1353 = vmatprep.subr.mxu0 0.0
    %1354 = vmatpush1.msra.mxu0 0.0
    %1355 = vmatprep.subr.mxu0 0.0
    %1356 = vmatpush1.msra.mxu0 0.0
    %1357 = vmatprep.mubr.f32.mxu0 0.0
    %1358 = vmatmul.mubr.f32.gmra.mrb[0].mxu0 %v1285
    %v1359 = vpop.f32.mrb[0].mxu0
    %v1360 = vadd.f32 %v1271, %v1359
    %v1361 = vpop.f32.mrb[0].mxu0
    %1362 = vmatprep.mubr.f32.mxu0 0.0
    %1363 = vmatmul.mubr.f32.gmra.mrb[0].mxu0 %v1287
    %v1364 = vpop.f32.mrb[0].mxu0
    %v1365 = vadd.f32 %v1275, %v1364
    %v1366 = vpop.f32.mrb[0].mxu0
    %1367 = vmatprep.mubr.f32.mxu0 0.0
    %1368 = vmatmul.mubr.f32.gmra.mrb[0].mxu0 %v1289
    %v1369 = vpop.f32.mrb[0].mxu0
    %v1370 = vadd.f32 %v1279, %v1369
    %v1371 = vpop.f32.mrb[0].mxu0
    %1372 = vmatprep.mubr.f32.mxu0 0.0
    %1373 = vmatmul.mubr.f32.gmra.mrb[0].mxu0 %v1291
    %v1374 = vpop.f32.mrb[0].mxu0
    %v1375 = vadd.f32 %v1283, %v1374
    %v1376 = vpop.f32.mrb[0].mxu0
    %1377 = vdwg.mxu0
    %v1378 = vmax.f32 %v1360, 0.0
    %v1379 = vmax.f32 %v1365, 0.0
    %v1380 = vmax.f32 %v1370, 0.0
    %v1381 = vmax.f32 %v1375, 0.0
    %vm1382 = vcmask 15360
    %v1383 = vsel %vm1382, %v1378, 0.0
    %1384 = vadd.xlane.f32.xlu0 %v1383
    %v1385 = vpop.xlane.xlu0 %1384
    %v1386 = vsel %vm1382, %v1379, 0.0
    %1387 = vadd.xlane.f32.xlu0 %v1386
    %v1388 = vpop.xlane.xlu0 %1387
    %v1389 = vsel %vm1382, %v1380, 0.0
    %1390 = vadd.xlane.f32.xlu0 %v1389
    %v1391 = vpop.xlane.xlu0 %1390
    %v1392 = vsel %vm1382, %v1381, 0.0
    %1393 = vadd.xlane.f32.xlu0 %v1392
    %v1394 = vpop.xlane.xlu0 %1393
    %v1395 = vmul.f32 %v1385, 0.5
    %v1396 = vmul.f32 %v1388, 0.5
    %v1397 = vmul.f32 %v1391, 0.5
    %v1398 = vmul.f32 %v1394, 0.5
    %v1399 = vsub.f32 %v1378, %v1395
    %v1400 = vsub.f32 %v1379, %v1396
    %v1401 = vsub.f32 %v1380, %v1397
    %v1402 = vsub.f32 %v1381, %v1398
    %v1403 = vmul.f32 %v1399, %v1399
    %v1404 = vmul.f32 %v1400, %v1400
    %v1405 = vmul.f32 %v1401, %v1401
    %v1406 = vmul.f32 %v1402, %v1402
    %v1407 = vsel %vm1382, %v1403, 0.0
    %1408 = vadd.xlane.f32.xlu0 %v1407
    %v1409 = vpop.xlane.xlu0 %1408
    %v1410 = vsel %vm1382, %v1404, 0.0
    %1411 = vadd.xlane.f32.xlu0 %v1410
    %v1412 = vpop.xlane.xlu0 %1411
    %v1413 = vsel %vm1382, %v1405, 0.0
    %1414 = vadd.xlane.f32.xlu0 %v1413
    %v1415 = vpop.xlane.xlu0 %1414
    %v1416 = vsel %vm1382, %v1406, 0.0
    %1417 = vadd.xlane.f32.xlu0 %v1416
    %v1418 = vpop.xlane.xlu0 %1417
    %v1419 = vmul.f32 %v1409, 0.5
    %v1420 = vmul.f32 %v1412, 0.5
    %v1421 = vmul.f32 %v1415, 0.5
    %v1422 = vmul.f32 %v1418, 0.5
    %v1423 = vadd.f32 %v1419, 1e-05
    %v1424 = vadd.f32 %v1420, 1e-05
    %v1425 = vadd.f32 %v1421, 1e-05
    %v1426 = vadd.f32 %v1422, 1e-05
    %v1427 = vrsqrt.pop %v1423
    %v1428 = vrsqrt.pop %v1424
    %v1429 = vrsqrt.pop %v1425
    %v1430 = vrsqrt.pop %v1426
    %v1431 = vmul.f32 %v1399, %v1427
    %v1432 = vmul.f32 %v1400, %v1428
    %v1433 = vmul.f32 %v1401, %v1429
    %v1434 = vmul.f32 %v1402, %v1430
    %1435 = vset.pattern.permute.xlu0 47
    %1436 = vperm.xlu0 %1435, %v74
    %v1437 = vpop.permute.xlu0 %1436
    %1439 = vset.pattern.permute.xlu0 47
    %1440 = vperm.xlu0 %1439, %v75
    %v1441 = vpop.permute.xlu0 %1440
    %1443 = vset.pattern.permute.xlu0 47
    %1444 = vperm.xlu0 %1443, %v76
    %v1445 = vpop.permute.xlu0 %1444
    %1447 = vset.pattern.permute.xlu0 47
    %1448 = vperm.xlu0 %1447, %v77
    %v1449 = vpop.permute.xlu0 %1448
    %v1451 = vmul.f32 %v1431, %v1437
    %v1452 = vmul.f32 %v1432, %v1441
    %v1453 = vmul.f32 %v1433, %v1445
    %v1454 = vmul.f32 %v1434, %v1449
    %1455 = vset.pattern.permute.xlu0 48
    %1456 = vperm.xlu0 %1455, %v74
    %v1457 = vpop.permute.xlu0 %1456
    %1459 = vset.pattern.permute.xlu0 48
    %1460 = vperm.xlu0 %1459, %v75
    %v1461 = vpop.permute.xlu0 %1460
    %1463 = vset.pattern.permute.xlu0 48
    %1464 = vperm.xlu0 %1463, %v76
    %v1465 = vpop.permute.xlu0 %1464
    %1467 = vset.pattern.permute.xlu0 48
    %1468 = vperm.xlu0 %1467, %v77
    %v1469 = vpop.permute.xlu0 %1468
    %v1471 = vadd.f32 %v1451, %v1457
    %v1472 = vadd.f32 %v1452, %v1461
    %v1473 = vadd.f32 %v1453, %v1465
    %v1474 = vadd.f32 %v1454, %v1469
    %1475 = vset.pattern.permute.xlu0 49
    %1476 = vperm.xlu0 %1475, %v74
    %v1477 = vpop.permute.xlu0 %1476
    %1479 = vset.pattern.permute.xlu0 49
    %1480 = vperm.xlu0 %1479, %v75
    %v1481 = vpop.permute.xlu0 %1480
    %1483 = vset.pattern.permute.xlu0 49
    %1484 = vperm.xlu0 %1483, %v76
    %v1485 = vpop.permute.xlu0 %1484
    %1487 = vset.pattern.permute.xlu0 49
    %1488 = vperm.xlu0 %1487, %v77
    %v1489 = vpop.permute.xlu0 %1488
    %v1491 = vmul.f32 %v1471, %v1477
    %v1492 = vmul.f32 %v1472, %v1481
    %v1493 = vmul.f32 %v1473, %v1485
    %v1494 = vmul.f32 %v1474, %v1489
    %v1495 = vsel %vm1382, %v1491, 0.0
    %v1496 = vsel %vm1382, %v1492, 0.0
    %v1497 = vadd.f32 %v1495, %v1496
    %v1498 = vsel %vm1382, %v1493, 0.0
    %v1499 = vadd.f32 %v1497, %v1498
    %v1500 = vsel %vm1382, %v1494, 0.0
    %v1501 = vadd.f32 %v1499, %v1500
    %v1502 = vrot.slane %v1501, 4
    %v1503 = vadd.f32 %v1501, %v1502
    %v1504 = vrot.slane %v1503, 2
    %v1505 = vadd.f32 %v1503, %v1504
    %v1506 = vrot.slane %v1505, 1
    %v1507 = vadd.f32 %v1505, %v1506
    %v1508 = vld [vmem:[#allocation5] sm:$0x1]
    %1510 = vset.pattern.permute.xlu0 50
    %1511 = vperm.xlu0 %1510, %v1508
    %v1512 = vpop.permute.xlu0 %1511
    %v1514 = vadd.f32 %v1507, %v1512
    %vm1515 = vcmask 8192
    %1516 = vst.msk [vmem:[#allocation7] sm:$0x1] %vm1515, %v1514
    // Predicated region
    $region34: #{tpu_custom_call.1} parent=1 // pred_check
      _
    $region35: #{tpu_custom_call.1} parent=1 // pred_check_branch
      %1518 = sbr.rel (0) target = $region37
    $region36: #{tpu_custom_call.1} parent=1 // pred_region
      %s1520 = ssub.s32 16, 16
      %1521 = vsyncadd [#allocation4], %s1520
      %s1523 = sshll.u32 [#allocation7], 4
      %s1524 = int_to_ptr.vmem [resolvable:$true] %s1523
      %1526 = dma.vmem_to_hbm [thread:$0]  %s1524, 16, %s6, [#allocation4]
    $region37: #{tpu_custom_call.1} parent=1 // pred_fallthru
      _
    // Predicated region
    $region38: #{tpu_custom_call.1} parent=1 // pred_check
      _
    $region39: #{tpu_custom_call.1} parent=1 // pred_check_branch
      %1528 = sbr.rel (0) target = $region41
    $region40: #{tpu_custom_call.1} parent=1 // pred_region
      %1529 = dma.done [#allocation4], 16
    $region41: #{tpu_custom_call.1} parent=1 // pred_fallthru
      _
    %1530 = vsyncpa [#allocation3], 1
    %1531 = vsyncpa [#allocation6], 1
    %1532 = vsyncpa [#allocation4], 1

</llo_original>
